<compile_context>
chip_gen: v5e
topology: v5e:2x2
jax: 0.10.0
libtpu: 0.0.40
codegen_flags: <defaults>
</compile_context>

<pallas_src>
import functools

import jax
import jax.numpy as jnp
import numpy as np
from jax.experimental import pallas as pl
from jax.experimental.pallas import tpu as pltpu

_EPS = 1e-10


def _inv_grid_sampler_kernel(x_ref, g_ref, out_ref, acc_ref, *, h, w, hole, c_blk):
    # x_ref  : (1, Cb, Nt)   input dtype
    # g_ref  : (1, 2, Nt)    f32; row 0 = gi (canvas row coord), row 1 = gj
    # out_ref: (1, Cb, h, w) f32
    # acc_ref: ((Cb+1)*h, w) f32; rows [0, Cb*h) numerator, rows [Cb*h, ...) denominator
    k = pl.program_id(2)

    @pl.when(k == 0)
    def _init():
        acc_ref[...] = jnp.zeros_like(acc_ref)

    nt = x_ref.shape[2]

    g = g_ref[0]                          # (2, Nt)
    gi = g[0:1, :]                        # (1, Nt)   broadcasts along sublanes
    gj = g[1:2, :]                        # (1, Nt)

    # Separable soft one-hot bilinear weights, built only over the cropped
    # output range (canvas rows/cols 1..h / 1..w) -> no crop slices afterwards.
    oi = jax.lax.broadcasted_iota(jnp.int32, (h, nt), 0).astype(jnp.float32) + 1.0
    pt = jnp.maximum(1.0 - jnp.abs(gi - oi), 0.0)          # (h, Nt)
    oj = jax.lax.broadcasted_iota(jnp.int32, (w, nt), 0).astype(jnp.float32) + 1.0
    qt = jnp.maximum(1.0 - jnp.abs(gj - oj), 0.0)          # (w, Nt)

    # Fused LHS: all channels stacked along M, plus one "ones" channel whose h
    # rows produce the denominator inside the same matmul (single RHS push).
    x32 = x_ref[0].astype(jnp.float32)                     # (Cb, Nt)
    xext = jnp.concatenate([x32, jnp.ones((1, nt), jnp.float32)], axis=0)
    lhs = (xext[:, None, :] * pt[None, :, :]).reshape((c_blk + 1) * h, nt)

    # Contract the shared N axis (last dim of BOTH operands) on the MXU.
    dn = (((1,), (1,)), ((), ()))
    acc_ref[...] += jax.lax.dot_general(
        lhs, qt, dn, precision=jax.lax.Precision.HIGHEST,
        preferred_element_type=jnp.float32)                # ((Cb+1)*h, w)

    @pl.when(k == pl.num_programs(2) - 1)
    def _finalize():
        acc = acc_ref[...]
        den = acc[c_blk * h:, :]                           # (h, w)
        num = acc[:c_blk * h, :].reshape(c_blk, h, w)      # (Cb, h, w)
        holes = den <= _EPS
        inv = pl.reciprocal(den + _EPS, approx=False)      # once, not per channel
        scale = jnp.where(holes, jnp.float32(0.0), inv)
        fill = jnp.where(holes, jnp.float32(hole), jnp.float32(0.0))
        out_ref[0] = (num * scale[None] + fill[None]).astype(out_ref.dtype)


def _round_up(a, m):
    return (a + m - 1) // m * m


def _choose_n_tile(n):
    if n <= 2048:
        return _round_up(n, 128)
    return 2048


def _choose_c_block(c, h, n_tile, budget_bytes=8 * 1024 * 1024):
    # x BlockSpec rule: channel block must equal C or be a multiple of 8.
    cands = [d for d in range(1, c + 1) if c % d == 0 and (d == c or d % 8 == 0)]
    fitting = [d for d in cands if (d + 1) * h * n_tile * 4 <= budget_bytes]
    return max(fitting) if fitting else min(cands)


def inv_grid_sampler_decomposed(x, inv_grid, OH=None, OW=None, hole_fill_color=1.0):
    """Pallas implementation of InvGridSamplerDecomposed.forward (default flags)."""
    B, C, Hin, Win = x.shape
    h = Hin if OH is None else OH
    w = Win if OW is None else OW
    N = Hin * Win

    n_tile = _choose_n_tile(N)
    n_pad = _round_up(N, n_tile)
    n_k = n_pad // n_tile
    c_blk = _choose_c_block(C, h, n_tile)
    n_cb = C // c_blk

    # Grid transform (matches the PyTorch code), done once in the wrapper.
    g = inv_grid.astype(jnp.float32)
    gi = jnp.clip((g[..., 0] + 1.0) * 0.5 * h + 1.0, 0.0, h + 1 - 2.0 * _EPS)
    gj = jnp.clip((g[..., 1] + 1.0) * 0.5 * w + 1.0, 0.0, w + 1 - 2.0 * _EPS)
    g2 = jnp.stack([gi.reshape(B, N), gj.reshape(B, N)], axis=1)   # (B, 2, N) lane-dense

    x_flat = x.reshape(B, C, N)          # keep input dtype in HBM

    if n_pad != N:
        pad = n_pad - N
        # Padded grid value 0.0 has zero bilinear weight over rows/cols 1..h / 1..w.
        x_flat = jnp.pad(x_flat, ((0, 0), (0, 0), (0, pad)))
        g2 = jnp.pad(g2, ((0, 0), (0, 0), (0, pad)))

    kernel = functools.partial(_inv_grid_sampler_kernel,
                               h=h, w=w, hole=float(hole_fill_color), c_blk=c_blk)

    # VMEM sizing: dominant live term is the fused LHS ((Cb+1)*h, Nt) f32 plus
    # its pre-reshape broadcast product; add pipelined blocks, the accumulator
    # and finalize temporaries.
    lane_w = _round_up(w, 128)
    h8 = _round_up(h, 8)
    est = 4 * (2 * (c_blk + 1) * h * n_tile          # LHS product + reshape copy
               + (h8 + _round_up(w, 8)) * n_tile     # Pt, Qt
               + 2 * (c_blk + 1) * n_tile            # x32 + xext
               + (c_blk + 1) * h8 * lane_w           # accumulator scratch
               + 4 * c_blk * h8 * lane_w)            # finalize temporaries
    est += 2 * _round_up(c_blk, 8) * n_tile * x_flat.dtype.itemsize   # x blocks
    est += 2 * 8 * n_tile * 4                                         # g blocks
    est += 2 * c_blk * h8 * lane_w * 4                                # out blocks
    vmem_limit = int(min(max(int(est * 1.25), 32 * 1024 * 1024), 64 * 1024 * 1024))

    return pl.pallas_call(
        kernel,
        out_shape=jax.ShapeDtypeStruct((B, C, h, w), jnp.float32),
        grid_spec=pltpu.PrefetchScalarGridSpec(
            num_scalar_prefetch=0,
            grid=(B, n_cb, n_k),
            in_specs=[
                pl.BlockSpec((1, c_blk, n_tile), lambda b, c, k: (b, c, k)),
                pl.BlockSpec((1, 2, n_tile), lambda b, c, k: (b, 0, k)),
            ],
            out_specs=pl.BlockSpec((1, c_blk, h, w), lambda b, c, k: (b, c, 0, 0)),
            scratch_shapes=[
                pltpu.VMEM(((c_blk + 1) * h, w), jnp.float32),   # num+den accumulator
            ],
        ),
        compiler_params=pltpu.CompilerParams(
            dimension_semantics=("parallel", "parallel", "arbitrary"),
            vmem_limit_bytes=vmem_limit),
    )(x_flat, g2)


def _reference(x, inv_grid, OH=None, OW=None, hole=1.0):
    """Pure-JAX scatter-add reference mirroring the PyTorch code."""
    Bz, C, Hin, Win = x.shape
    h = Hin if OH is None else OH
    w = Win if OW is None else OW
    gi = jnp.clip((inv_grid[..., 0] + 1.0) * 0.5 * h + 1.0, 0.0, h + 1 - 2.0 * _EPS)
    gj = jnp.clip((inv_grid[..., 1] + 1.0) * 0.5 * w + 1.0, 0.0, w + 1 - 2.0 * _EPS)
    fi = jnp.floor(gi).astype(jnp.int32)
    fj = jnp.floor(gj).astype(jnp.int32)
    bidx = jnp.broadcast_to(jnp.arange(Bz)[:, None, None], (Bz, Hin, Win))
    cidx = jnp.arange(C)[None, :, None, None]
    A = jnp.zeros((Bz, C, h + 3, w + 3), jnp.float32)
    D = jnp.zeros((Bz, h + 3, w + 3), jnp.float32)
    for di in range(2):
        ii = fi + di
        wi = jnp.maximum(1.0 - jnp.abs(gi - ii.astype(jnp.float32)), 0.0)
        for dj in range(2):
            jj = fj + dj
            wj = jnp.maximum(1.0 - jnp.abs(gj - jj.astype(jnp.float32)), 0.0)
            wt = wi * wj
            D = D.at[bidx, ii, jj].add(wt)
            A = A.at[bidx[:, None], cidx, ii[:, None], jj[:, None]].add(x * wt[:, None])
    A = A[:, :, 1:h + 1, 1:w + 1]
    Dc = D[:, 1:h + 1, 1:w + 1][:, None]
    return jnp.where(Dc > _EPS, A / (Dc + _EPS), hole)


if __name__ == "__main__":
    key = jax.random.PRNGKey(0)
    kx, kg = jax.random.split(key)
    B, C, H, W = 2, 4, 16, 16
    # NOTE: the module has no learnable parameters; inputs are the only state.
    x = jax.random.normal(kx, (B, C, H, W), dtype=jnp.float32)
    inv_grid = jax.random.uniform(kg, (B, H, W, 2), dtype=jnp.float32,
                                  minval=-1.1, maxval=1.1)

    out = jax.block_until_ready(inv_grid_sampler_decomposed(x, inv_grid))

    ref = jax.block_until_ready(_reference(x, inv_grid))
    np.testing.assert_allclose(np.asarray(out), np.asarray(ref),
                               rtol=1e-3, atol=1e-3)
    print("KERNEL_OK")
</pallas_src>

<mosaic_0001>
module attributes {stable_mosaic.version = 11 : i64} {
  func.func @_inv_grid_sampler_kernel(%arg0: i32, %arg1: i32, %arg2: i32, %arg3: memref<1x4x256xf32, #tpu.memory_space<vmem>>, %arg4: memref<1x2x256xf32, #tpu.memory_space<vmem>>, %arg5: memref<1x4x16x16xf32, #tpu.memory_space<vmem>>, %arg6: memref<80x16xf32, #tpu.memory_space<vmem>>) attributes {dimension_semantics = [#tpu.dimension_semantics<parallel>, #tpu.dimension_semantics<parallel>, #tpu.dimension_semantics<arbitrary>], iteration_bounds = array<i64: 2, 1, 1>, scalar_prefetch = 0 : i64, scratch_operands = 1 : i64, tpu.core_type = #tpu.core_type<tc>, window_params = [{transform_indices = @transform_0, window_bounds = array<i64: 1, 4, 256>}, {transform_indices = @transform_1, window_bounds = array<i64: 1, 2, 256>}, {transform_indices = @transform_2, window_bounds = array<i64: 1, 4, 16, 16>}]} {
    %c0_i32 = arith.constant 0 : i32
    %0 = arith.cmpi eq, %arg2, %c0_i32 : i32
    %1 = arith.extui %0 : i1 to i32
    %c0_i32_0 = arith.constant 0 : i32
    %2 = arith.cmpi ne, %1, %c0_i32_0 : i32
    scf.if %2 {
      %cst_19 = arith.constant 0.000000e+00 : f32
      %46 = vector.broadcast %cst_19 : f32 to vector<80x16xf32>
      %c0_20 = arith.constant 0 : index
      %c0_21 = arith.constant 0 : index
      %47 = vector.load %arg6[%c0_20, %c0_21] : memref<80x16xf32, #tpu.memory_space<vmem>>, vector<80x16xf32>
      tpu.vector_store %arg6[%c0_20, %c0_21], %46 {strides = array<i32>} : memref<80x16xf32, #tpu.memory_space<vmem>>, vector<80x16xf32>,
    } else {
    }
    %c0 = arith.constant 0 : index
    %c0_1 = arith.constant 0 : index
    %c0_2 = arith.constant 0 : index
    %3 = vector.load %arg4[%c0, %c0_1, %c0_2] : memref<1x2x256xf32, #tpu.memory_space<vmem>>, vector<1x2x256xf32>
    %4 = vector.shape_cast %3 : vector<1x2x256xf32> to vector<2x256xf32>
    %5 = vector.extract_strided_slice %4 {offsets = [0, 0], sizes = [1, 256], strides = [1, 1]} : vector<2x256xf32> to vector<1x256xf32>
    %6 = vector.extract_strided_slice %4 {offsets = [1, 0], sizes = [1, 256], strides = [1, 1]} : vector<2x256xf32> to vector<1x256xf32>
    %7 = tpu.iota {dimensions = array<i32: 0>} : vector<16x256xi32>
    %8 = arith.sitofp %7 : vector<16x256xi32> to vector<16x256xf32>
    %cst = arith.constant 1.000000e+00 : f32
    %9 = vector.broadcast %cst : f32 to vector<16x256xf32>
    %10 = arith.addf %8, %9 : vector<16x256xf32>
    %11 = vector.broadcast %5 : vector<1x256xf32> to vector<16x256xf32>
    %12 = arith.subf %11, %10 : vector<16x256xf32>
    %13 = math.absf %12 : vector<16x256xf32>
    %cst_3 = arith.constant 1.000000e+00 : f32
    %14 = vector.broadcast %cst_3 : f32 to vector<16x256xf32>
    %15 = arith.subf %14, %13 : vector<16x256xf32>
    %cst_4 = arith.constant 0.000000e+00 : f32
    %16 = vector.broadcast %cst_4 : f32 to vector<16x256xf32>
    %17 = arith.maximumf %15, %16 : vector<16x256xf32>
    %18 = tpu.iota {dimensions = array<i32: 0>} : vector<16x256xi32>
    %19 = arith.sitofp %18 : vector<16x256xi32> to vector<16x256xf32>
    %cst_5 = arith.constant 1.000000e+00 : f32
    %20 = vector.broadcast %cst_5 : f32 to vector<16x256xf32>
    %21 = arith.addf %19, %20 : vector<16x256xf32>
    %22 = vector.broadcast %6 : vector<1x256xf32> to vector<16x256xf32>
    %23 = arith.subf %22, %21 : vector<16x256xf32>
    %24 = math.absf %23 : vector<16x256xf32>
    %cst_6 = arith.constant 1.000000e+00 : f32
    %25 = vector.broadcast %cst_6 : f32 to vector<16x256xf32>
    %26 = arith.subf %25, %24 : vector<16x256xf32>
    %cst_7 = arith.constant 0.000000e+00 : f32
    %27 = vector.broadcast %cst_7 : f32 to vector<16x256xf32>
    %28 = arith.maximumf %26, %27 : vector<16x256xf32>
    %c0_8 = arith.constant 0 : index
    %c0_9 = arith.constant 0 : index
    %c0_10 = arith.constant 0 : index
    %29 = vector.load %arg3[%c0_8, %c0_9, %c0_10] : memref<1x4x256xf32, #tpu.memory_space<vmem>>, vector<1x4x256xf32>
    %30 = vector.shape_cast %29 : vector<1x4x256xf32> to vector<4x256xf32>
    %cst_11 = arith.constant 1.000000e+00 : f32
    %31 = vector.broadcast %cst_11 : f32 to vector<1x256xf32>
    %32 = tpu.concatenate %30, %31 in 0 : vector<4x256xf32>, vector<1x256xf32> -> vector<5x256xf32>
    %33 = vector.shape_cast %32 : vector<5x256xf32> to vector<5x1x256xf32>
    %34 = vector.shape_cast %17 : vector<16x256xf32> to vector<1x16x256xf32>
    %35 = vector.broadcast %33 : vector<5x1x256xf32> to vector<5x16x256xf32>
    %36 = vector.broadcast %34 : vector<1x16x256xf32> to vector<5x16x256xf32>
    %37 = arith.mulf %35, %36 : vector<5x16x256xf32>
    %38 = vector.shape_cast %37 : vector<5x16x256xf32> to vector<80x256xf32>
    %c0_12 = arith.constant 0 : index
    %c0_13 = arith.constant 0 : index
    %39 = vector.load %arg6[%c0_12, %c0_13] : memref<80x16xf32, #tpu.memory_space<vmem>>, vector<80x16xf32>
    %cst_14 = arith.constant dense<0.000000e+00> : vector<80x16xf32>
    %40 = tpu.matmul %38, %28, %cst_14 {dimension_numbers = #tpu.dot_dimension_numbers<[1], [1], [0], [0], [0, 0, 1, 0], [], []>, precision = #tpu.contract_precision<fp32>} : vector<80x256xf32>, vector<16x256xf32>, vector<80x16xf32> -> vector<80x16xf32>
    %41 = arith.addf %39, %40 : vector<80x16xf32>
    %c0_15 = arith.constant 0 : index
    %c0_16 = arith.constant 0 : index
    %42 = vector.load %arg6[%c0_15, %c0_16] : memref<80x16xf32, #tpu.memory_space<vmem>>, vector<80x16xf32>
    tpu.vector_store %arg6[%c0_15, %c0_16], %41 {strides = array<i32>} : memref<80x16xf32, #tpu.memory_space<vmem>>, vector<80x16xf32>,
    %c0_i32_17 = arith.constant 0 : i32
    %43 = arith.cmpi eq, %arg2, %c0_i32_17 : i32
    %44 = arith.extui %43 : i1 to i32
    %c0_i32_18 = arith.constant 0 : i32
    %45 = arith.cmpi ne, %44, %c0_i32_18 : i32
    scf.if %45 {
      %c0_19 = arith.constant 0 : index
      %c0_20 = arith.constant 0 : index
      %46 = vector.load %arg6[%c0_19, %c0_20] : memref<80x16xf32, #tpu.memory_space<vmem>>, vector<80x16xf32>
      %47 = vector.extract_strided_slice %46 {offsets = [64, 0], sizes = [16, 16], strides = [1, 1]} : vector<80x16xf32> to vector<16x16xf32>
      %48 = vector.extract_strided_slice %46 {offsets = [0, 0], sizes = [64, 16], strides = [1, 1]} : vector<80x16xf32> to vector<64x16xf32>
      %49 = vector.shape_cast %48 : vector<64x16xf32> to vector<4x16x16xf32>
      %cst_21 = arith.constant 1.000000e-10 : f32
      %50 = vector.broadcast %cst_21 : f32 to vector<16x16xf32>
      %51 = arith.cmpf ole, %47, %50 : vector<16x16xf32>
      %cst_22 = arith.constant 1.000000e-10 : f32
      %52 = vector.broadcast %cst_22 : f32 to vector<16x16xf32>
      %53 = arith.addf %47, %52 : vector<16x16xf32>
      %54 = tpu.reciprocal %53 : vector<16x16xf32> -> vector<16x16xf32>
      %cst_23 = arith.constant 0.000000e+00 : f32
      %55 = vector.broadcast %cst_23 : f32 to vector<16x16xf32>
      %56 = arith.select %51, %55, %54 : vector<16x16xi1>, vector<16x16xf32>
      %cst_24 = arith.constant 1.000000e+00 : f32
      %cst_25 = arith.constant 0.000000e+00 : f32
      %57 = vector.broadcast %cst_24 : f32 to vector<16x16xf32>
      %58 = vector.broadcast %cst_25 : f32 to vector<16x16xf32>
      %59 = arith.select %51, %57, %58 : vector<16x16xi1>, vector<16x16xf32>
      %60 = vector.shape_cast %56 : vector<16x16xf32> to vector<1x16x16xf32>
      %61 = vector.broadcast %60 : vector<1x16x16xf32> to vector<4x16x16xf32>
      %62 = arith.mulf %49, %61 : vector<4x16x16xf32>
      %63 = vector.shape_cast %59 : vector<16x16xf32> to vector<1x16x16xf32>
      %64 = vector.broadcast %63 : vector<1x16x16xf32> to vector<4x16x16xf32>
      %65 = arith.addf %62, %64 : vector<4x16x16xf32>
      %c0_26 = arith.constant 0 : index
      %c0_27 = arith.constant 0 : index
      %c0_28 = arith.constant 0 : index
      %c0_29 = arith.constant 0 : index
      %66 = vector.load %arg5[%c0_26, %c0_27, %c0_28, %c0_29] : memref<1x4x16x16xf32, #tpu.memory_space<vmem>>, vector<1x4x16x16xf32>
      %67 = vector.shape_cast %66 : vector<1x4x16x16xf32> to vector<4x16x16xf32>
      %68 = vector.shape_cast %65 : vector<4x16x16xf32> to vector<1x4x16x16xf32>
      tpu.vector_store %arg5[%c0_26, %c0_27, %c0_28, %c0_29], %68 {strides = array<i32>} : memref<1x4x16x16xf32, #tpu.memory_space<vmem>>, vector<1x4x16x16xf32>,
    } else {
    }
    return
  }
  func.func @transform_0(%arg0: i32, %arg1: i32, %arg2: i32) -> (i32, i32, i32) {
    %c0_i32 = arith.constant 0 : i32
    return %arg0, %arg1, %arg2 : i32, i32, i32
  }
  func.func @transform_1(%arg0: i32, %arg1: i32, %arg2: i32) -> (i32, i32, i32) {
    %c0_i32 = arith.constant 0 : i32
    %c0_i32_0 = arith.constant 0 : i32
    return %arg0, %c0_i32, %arg2 : i32, i32, i32
  }
  func.func @transform_2(%arg0: i32, %arg1: i32, %arg2: i32) -> (i32, i32, i32, i32) {
    %c0_i32 = arith.constant 0 : i32
    %c0_i32_0 = arith.constant 0 : i32
    %c0_i32_1 = arith.constant 0 : i32
    return %arg0, %arg1, %c0_i32, %c0_i32_0 : i32, i32, i32, i32
  }
}

</mosaic_0001>

<llo_original>
// kernel: tpu_custom_call.1
$region0: #{tpu_custom_call.1}
  #allocation0 [shape = 'u32[]', space=smem, size = 0x4, offset = 0x4, fixed_abs, tag = 'smem constant byte address 0x4 - core index']
  #allocation1 [shape = 'u32[72,128]{1,0:T(1,128)}', space=vmem, size = 0x9000, scoped, tag = 'internal scratch']
  #allocation2 [shape = 'f32[80,16]{1,0:T(8,128)}', space=vmem, size = 0xa000, scoped, tag = 'scratch operand']
  %s0 = inlined_call_operand.hbm [shape: f32[2,4,256], index: 0, kind: input, shape index: {}]
  %s1 = inlined_call_operand.hbm [shape: f32[2,2,256], index: 1, kind: input, shape index: {}]
  %s2 = inlined_call_operand.hbm [shape: f32[2,4,16,16], index: 2, kind: output, shape index: {}]
  %s3 = sld [smem:[#allocation0]]
  $region57: #{tpu_custom_call.1} parent=0
    _
  %s5 = ssub.s32 1, %s3
  %s6 = scalar_select 0, %s5, %s3
  $region1: #{tpu_custom_call.1} parent=0
    #allocation3 [shape = 'u8[8192]{0}', space=vmem, size = 0x2000, scoped, tag = 'input window, operand 0']
    #allocation4 [shape = 's32[2]{0}', space=sflag, size = 0x8, scoped, tag = 'scoped memory for tpu_custom_call.1']
    #allocation5 [shape = 's32[2]{0}', space=sflag, size = 0x8, scoped, tag = 'scoped memory for tpu_custom_call.1']
    #allocation6 [shape = 'u8[4096]{0}', space=vmem, size = 0x1000, scoped, tag = 'input window, operand 1']
    #allocation7 [shape = 's32[2]{0}', space=sflag, size = 0x8, scoped, tag = 'scoped memory for tpu_custom_call.1']
    #allocation8 [shape = 'u8[65536]{0}', space=vmem, size = 0x10000, scoped, tag = 'output window, operand 0']
    %7 = vsyncpa [#allocation4], 0
    %s8 = scalar_lea.sflag [#allocation4], 1
    %9 = vsyncpa %s8, 0
    %10 = vsyncpa [#allocation7], 0
    %s11 = scalar_lea.sflag [#allocation7], 1
    %12 = vsyncpa %s11, 0
    %13 = vsyncpa [#allocation5], 0
    %s14 = scalar_lea.sflag [#allocation5], 1
    %15 = vsyncpa %s14, 0
    loop: start=0, step=1, limit=4
    $region2: #{tpu_custom_call.1} parent=1 // loop_pre_header
      _
    $region3: #{tpu_custom_call.1} parent=1 // loop_header
      %s17 = sphi 0, %s21
      %p18 = scmp.ge.s32.totalorder %s17, 4
      %s24 = sphi 0, %s43
      %s25 = sphi 0, %s39
      %s26 = sphi 0, %s35
      %s27 = sphi 0, %s24
      %s28 = sphi 0, %s25
      %s29 = sphi 0, %s26
      %s30 = sphi 0, %s27
      %s31 = sphi 0, %s28
      %s32 = sphi 0, %s29
      %s50 = sphi 0, %s52
      %s53 = sphi 0, %s50
      %s54 = sphi 0, %s53
      %s70 = sphi 0, %s54
      %s78 = sphi 0, %s80
      %s81 = sphi 0, %s78
      %s82 = sphi 0, %s81
      %s98 = sphi 0, %s82
      %s106 = sphi 0, %s108
      %s109 = sphi 0, %s106
      %s110 = sphi 0, %s109
      %s126 = sphi 0, %s110
    $region4: #{tpu_custom_call.1} parent=1 // loop_header_branch
      %20 = sbr.rel (%p18) target = $region8
    $region5: #{tpu_custom_call.1} parent=1 // loop_body
      %s22 = ssub.s32 %s17, 1
      %s23 = ssub.s32 %s17, 2
      %s33 = sadd.s32 1, %s26
      %p34 = scmp.ge.s32.totalorder %s33, 1
      %s35 = scalar_select %p34, 0, %s33
      %s36 = sadd.s32 1, %s25
      %s37 = scalar_select %p34, %s36, %s25
      %p38 = scmp.ge.s32.totalorder %s37, 1
      %s39 = scalar_select %p38, 0, %s37
      %s40 = sadd.s32 1, %s24
      %s41 = scalar_select %p38, %s40, %s24
      %p42 = scmp.ge.s32.totalorder %s41, 2
      %s43 = scalar_select %p42, 0, %s41
      %s44 = ssub.s32 %s24, %s43
      %s45 = ssub.s32 %s25, %s39
      %s46 = sor.u32 %s44, %s45
      %s47 = ssub.s32 %s26, %s35
      %s48 = sor.u32 %s46, %s47
      %p49 = scmp.eq.s32.totalorder %s48, 0
      %s51 = sadd.s32 %s50, 1
      %s52 = scalar_select %p49, %s50, %s51
      %p55 = pneg %p49
      %p56 = scmp.eq.s32.totalorder %s17, 1
      %p57 = por %p55, %p56
      %p58 = scmp.ne.s32.totalorder %s50, %s53
      %p59 = scmp.eq.s32.totalorder %s17, 0
      %p60 = por %p58, %p59
      %p61 = scmp.ne.s32.totalorder %s50, %s53
      %p62 = scmp.eq.s32.totalorder %s22, 1
      %p63 = por %p61, %p62
      %p64 = scmp.ne.s32.totalorder %s53, %s54
      %p65 = scmp.eq.s32.totalorder %s22, 0
      %p66 = por %p64, %p65
      %p67 = scmp.ne.s32.totalorder %s53, %s54
      %p68 = scmp.eq.s32.totalorder %s23, 1
      %p69 = por %p67, %p68
      %p71 = scmp.ne.s32.totalorder %s54, %s70
      %p72 = scmp.eq.s32.totalorder %s23, 0
      %p73 = por %p71, %p72
      %s74 = ssub.s32 %s24, %s43
      %s75 = ssub.s32 %s26, %s35
      %s76 = sor.u32 %s74, %s75
      %p77 = scmp.eq.s32.totalorder %s76, 0
      %s79 = sadd.s32 %s78, 1
      %s80 = scalar_select %p77, %s78, %s79
      %p83 = pneg %p77
      %p84 = scmp.eq.s32.totalorder %s17, 1
      %p85 = por %p83, %p84
      %p86 = scmp.ne.s32.totalorder %s78, %s81
      %p87 = scmp.eq.s32.totalorder %s17, 0
      %p88 = por %p86, %p87
      %p89 = scmp.ne.s32.totalorder %s78, %s81
      %p90 = scmp.eq.s32.totalorder %s22, 1
      %p91 = por %p89, %p90
      %p92 = scmp.ne.s32.totalorder %s81, %s82
      %p93 = scmp.eq.s32.totalorder %s22, 0
      %p94 = por %p92, %p93
      %p95 = scmp.ne.s32.totalorder %s81, %s82
      %p96 = scmp.eq.s32.totalorder %s23, 1
      %p97 = por %p95, %p96
      %p99 = scmp.ne.s32.totalorder %s82, %s98
      %p100 = scmp.eq.s32.totalorder %s23, 0
      %p101 = por %p99, %p100
      %s102 = ssub.s32 %s24, %s43
      %s103 = ssub.s32 %s25, %s39
      %s104 = sor.u32 %s102, %s103
      %p105 = scmp.eq.s32.totalorder %s104, 0
      %s107 = sadd.s32 %s106, 1
      %s108 = scalar_select %p105, %s106, %s107
      %p111 = pneg %p105
      %p112 = scmp.eq.s32.totalorder %s17, 1
      %p113 = por %p111, %p112
      %p114 = scmp.ne.s32.totalorder %s106, %s109
      %p115 = scmp.eq.s32.totalorder %s17, 0
      %p116 = por %p114, %p115
      %p117 = scmp.ne.s32.totalorder %s106, %s109
      %p118 = scmp.eq.s32.totalorder %s22, 1
      %p119 = por %p117, %p118
      %p120 = scmp.ne.s32.totalorder %s109, %s110
      %p121 = scmp.eq.s32.totalorder %s22, 0
      %p122 = por %p120, %p121
      %p123 = scmp.ne.s32.totalorder %s109, %s110
      %p124 = scmp.eq.s32.totalorder %s23, 1
      %p125 = por %p123, %p124
      %p127 = scmp.ne.s32.totalorder %s110, %s126
      %p128 = scmp.eq.s32.totalorder %s23, 0
      %p129 = por %p127, %p128
      %p130 = scmp.le.s32.totalorder 1, %s17
      %p131 = scmp.lt.s32.totalorder %s17, 3
      %p132 = pnand %p130, %p131
      %p133 = pneg %p132
      // Predicated region
      $region9: #{tpu_custom_call.1} parent=5 // pred_check
        _
      $region10: #{tpu_custom_call.1} parent=5 // pred_check_branch
        %135 = sbr.rel (%p132) target = $region12
      $region11: #{tpu_custom_call.1} parent=5 // pred_region
        %s136 = ssub.s32 %s17, 1
      $region12: #{tpu_custom_call.1} parent=5 // pred_fallthru
        _
      %p137 = scmp.lt.s32.totalorder %s17, 2
      // Predicated region
      $region13: #{tpu_custom_call.1} parent=5 // pred_check
        %p138 = pneg %p137
      $region14: #{tpu_custom_call.1} parent=5 // pred_check_branch
        %140 = sbr.rel (%p138) target = $region16
      $region15: #{tpu_custom_call.1} parent=5 // pred_region
        // Predicated region
        $region17: #{tpu_custom_call.1} parent=15 // pred_check
          %p141 = pneg %p60
        $region18: #{tpu_custom_call.1} parent=15 // pred_check_branch
          %143 = sbr.rel (%p141) target = $region20
        $region19: #{tpu_custom_call.1} parent=15 // pred_region
          %s144 = sand.u32 %s50, 1
          %s145 = scalar_lea.sflag [#allocation4], %s144
          %s146 = sand.u32 %s50, 1
          %s147 = smul.addr %s146, 8
          %s148 = scalar_lea.vmem [#allocation3], %s147
          %s149 = smul.u32 2, %s26
          %151 = vsyncadd %s145, 0
          %s152 = smul.addr %s25, 2
          %s153 = sadd.s32 %s149, %s152
          %s154 = smul.addr %s24, 2
          %s155 = sadd.s32 %s153, %s154
          %s156 = smul.addr %s155, 4
          %s157 = scalar_lea.hbm %s0, %s156
          %s159 = sshll.u32 %s157, 4
          %s160 = int_to_ptr.hbm [resolvable:$true] %s159
          %s161 = sshll.u32 %s148, 4
          %s162 = int_to_ptr.vmem [resolvable:$true] %s161
          %164 = dma.hbm_to_vmem [thread:$0]  %s160, 128, %s162, %s145
        $region20: #{tpu_custom_call.1} parent=15 // pred_fallthru
          _
        // Predicated region
        $region21: #{tpu_custom_call.1} parent=15 // pred_check
          %p165 = pneg %p88
        $region22: #{tpu_custom_call.1} parent=15 // pred_check_branch
          %167 = sbr.rel (%p165) target = $region24
        $region23: #{tpu_custom_call.1} parent=15 // pred_region
          %s168 = sand.u32 %s78, 1
          %s169 = scalar_lea.sflag [#allocation7], %s168
          %s170 = sand.u32 %s78, 1
          %s171 = smul.addr %s170, 4
          %s172 = scalar_lea.vmem [#allocation6], %s171
          %s173 = smul.u32 2, %s26
          %175 = vsyncadd %s169, 0
          %s176 = smul.addr %s24, 2
          %s177 = sadd.s32 %s173, %s176
          %s178 = smul.addr %s177, 2
          %s179 = scalar_lea.hbm %s1, %s178
          %s181 = sshll.u32 %s179, 4
          %s182 = int_to_ptr.hbm [resolvable:$true] %s181
          %s183 = sshll.u32 %s172, 4
          %s184 = int_to_ptr.vmem [resolvable:$true] %s183
          %186 = dma.hbm_to_vmem [thread:$0]  %s182, 64, %s184, %s169
        $region24: #{tpu_custom_call.1} parent=15 // pred_fallthru
          _
      $region16: #{tpu_custom_call.1} parent=5 // pred_fallthru
        _
      %p187 = scmp.le.s32.totalorder 1, %s17
      %p188 = scmp.lt.s32.totalorder %s17, 3
      %p189 = pnand %p187, %p188
      %p190 = pneg %p189
      // Predicated region
      $region25: #{tpu_custom_call.1} parent=5 // pred_check
        _
      $region26: #{tpu_custom_call.1} parent=5 // pred_check_branch
        %192 = sbr.rel (%p189) target = $region28
      $region27: #{tpu_custom_call.1} parent=5 // pred_region
        %s193 = ssub.s32 %s17, 1
        %s194 = sand.u32 %s53, 1
        %s195 = scalar_lea.sflag [#allocation4], %s194
        %s196 = sand.u32 %s53, 1
        %s197 = smul.addr %s196, 8
        %s198 = scalar_lea.vmem [#allocation3], %s197
        // Predicated region
        $region29: #{tpu_custom_call.1} parent=27 // pred_check
          %p199 = pneg %p66
        $region30: #{tpu_custom_call.1} parent=27 // pred_check_branch
          %201 = sbr.rel (%p199) target = $region32
        $region31: #{tpu_custom_call.1} parent=27 // pred_region
          %203 = dma.done %s195, 128
        $region32: #{tpu_custom_call.1} parent=27 // pred_fallthru
          _
        %s204 = sand.u32 %s81, 1
        %s205 = scalar_lea.sflag [#allocation7], %s204
        %s206 = sand.u32 %s81, 1
        %s207 = smul.addr %s206, 4
        %s208 = scalar_lea.vmem [#allocation6], %s207
        // Predicated region
        $region33: #{tpu_custom_call.1} parent=27 // pred_check
          %p209 = pneg %p94
        $region34: #{tpu_custom_call.1} parent=27 // pred_check_branch
          %211 = sbr.rel (%p209) target = $region36
        $region35: #{tpu_custom_call.1} parent=27 // pred_region
          %213 = dma.done %s205, 64
        $region36: #{tpu_custom_call.1} parent=27 // pred_fallthru
          _
        %s214 = sand.u32 %s53, 1
        %s215 = scalar_lea.sflag [#allocation4], %s214
        %s216 = sand.u32 %s53, 1
        %s217 = smul.addr %s216, 8
        %s218 = scalar_lea.vmem [#allocation3], %s217
        %p219 = pneg %p66
        %p220 = pneg %p63
        %s221 = sand.u32 %s81, 1
        %s222 = scalar_lea.sflag [#allocation7], %s221
        %s223 = sand.u32 %s81, 1
        %s224 = smul.addr %s223, 4
        %s225 = scalar_lea.vmem [#allocation6], %s224
        %p226 = pneg %p94
        %p227 = pneg %p91
        %p228 = pneg %p122
        %p229 = pneg %p119
        %s230 = sand.u32 %s109, 1
        %s231 = scalar_lea.sflag [#allocation5], %s230
        %s232 = sand.u32 %s109, 1
        %s233 = smul.addr %s232, 64
        %s234 = scalar_lea.vmem [#allocation8], %s233
        %s235 = smul.u32 2, %s29
        %s236 = smul.u32 2, %s29
        %s237 = smul.u32 4, %s28
        %p238 = scmp.eq.s32.totalorder %s29, 0
        // Predicated region
        $region37: #{tpu_custom_call.1} parent=27 // pred_check
          %p239 = pneg %p238
        $region38: #{tpu_custom_call.1} parent=27 // pred_check_branch
          %241 = sbr.rel (%p239) target = $region40
        $region39: #{tpu_custom_call.1} parent=27 // pred_region
          %vm242 = vcmask 130048
          %243 = vst.msk [vmem:[#allocation2] sm:$0xff] %vm242, 0.0
          %244 = vst.msk [vmem:[#allocation2 + $0x8] sm:$0xff] %vm242, 0.0
          %245 = vst.msk [vmem:[#allocation2 + $0x10] sm:$0xff] %vm242, 0.0
          %246 = vst.msk [vmem:[#allocation2 + $0x18] sm:$0xff] %vm242, 0.0
          %247 = vst.msk [vmem:[#allocation2 + $0x20] sm:$0xff] %vm242, 0.0
          %248 = vst.msk [vmem:[#allocation2 + $0x28] sm:$0xff] %vm242, 0.0
          %249 = vst.msk [vmem:[#allocation2 + $0x30] sm:$0xff] %vm242, 0.0
          %250 = vst.msk [vmem:[#allocation2 + $0x38] sm:$0xff] %vm242, 0.0
          %251 = vst.msk [vmem:[#allocation2 + $0x40] sm:$0xff] %vm242, 0.0
          %252 = vst.msk [vmem:[#allocation2 + $0x48] sm:$0xff] %vm242, 0.0
        $region40: #{tpu_custom_call.1} parent=27 // pred_fallthru
          _
        %v253 = vld [vmem:[%s208] sm:$0xf]
        %v254 = vlaneseq
        %v255 = vshrl.u32 %v254, 7
        %v256 = vadd.s32 %v255, 8
        %v257 = vcvt.s32.f32 %v255
        %v258 = vcvt.s32.f32 %v256
        %v259 = vadd.f32 %v257, 1.0
        %v260 = vadd.f32 %v258, 1.0
        %v262 = vperm.slane %v253, 0
        %v263 = vperm.slane %v253, 2
        %v266 = vperm.slane %v262, 0
        %v267 = vperm.slane %v263, 0
        %v268 = vsub.f32 %v266, %v259
        %v269 = vsub.f32 %v267, %v259
        %v270 = vsub.f32 %v266, %v260
        %v271 = vsub.f32 %v267, %v260
        %v272 = vand.u32 2147483647, %v268
        %v273 = vand.u32 2147483647, %v269
        %v274 = vand.u32 2147483647, %v270
        %v275 = vand.u32 2147483647, %v271
        %v276 = vsub.f32 1.0, %v272
        %v277 = vsub.f32 1.0, %v273
        %v278 = vsub.f32 1.0, %v274
        %v279 = vsub.f32 1.0, %v275
        %v280 = vmax.f32 %v276, 0.0
        %v281 = vmax.f32 %v277, 0.0
        %v282 = vmax.f32 %v278, 0.0
        %v283 = vmax.f32 %v279, 0.0
        %v284 = vperm.slane %v253, 1
        %v285 = vperm.slane %v253, 3
        %v288 = vperm.slane %v284, 1
        %v289 = vperm.slane %v285, 1
        %v290 = vsub.f32 %v288, %v259
        %v291 = vsub.f32 %v289, %v259
        %v292 = vsub.f32 %v288, %v260
        %v293 = vsub.f32 %v289, %v260
        %v294 = vand.u32 2147483647, %v290
        %v295 = vand.u32 2147483647, %v291
        %v296 = vand.u32 2147483647, %v292
        %v297 = vand.u32 2147483647, %v293
        %v298 = vsub.f32 1.0, %v294
        %v299 = vsub.f32 1.0, %v295
        %v300 = vsub.f32 1.0, %v296
        %v301 = vsub.f32 1.0, %v297
        %v302 = vmax.f32 %v298, 0.0
        %v303 = vmax.f32 %v299, 0.0
        %v304 = vmax.f32 %v300, 0.0
        %v305 = vmax.f32 %v301, 0.0
        %v306 = vld [vmem:[%s198] sm:$0xff]
        %308 = vst [vmem:[#allocation1] ss:$2 sm:$0xff] %v306
        %v309 = vld.sshfl [vmem:[#allocation1] sm:$0xff pattern:$0x75316420]
        %v310 = vld.sshfl [vmem:[#allocation1 + $0x8] sm:$0xff pattern:$0x75316420]
        %vm313 = vcmask 1043456
        %v314 = vsel %vm313, %v309, 1.0
        %v315 = vsel %vm313, %v310, 1.0
        %v318 = vrot.slane %v315, 7
        %vm319 = vcmask 1040384
        %v320 = vsel %vm319, %v314, %v318
        %vm321 = vcmask 1041409
        %v322 = vsel %vm321, %v314, %v318
        %v323 = vrot.slane %v322, 1
        %vm324 = vcmask 1042434
        %v325 = vsel %vm324, %v314, %v318
        %v326 = vrot.slane %v325, 2
        %vm327 = vcmask 1043459
        %v328 = vsel %vm327, %v314, %v318
        %v329 = vrot.slane %v328, 3
        %vm330 = vcmask 1044484
        %v331 = vsel %vm330, %v314, %v318
        %v332 = vrot.slane %v331, 4
        %v333 = vperm.slane %v320, 0
        %v334 = vperm.slane %v320, 1
        %v335 = vperm.slane %v323, 0
        %v336 = vperm.slane %v323, 1
        %v337 = vperm.slane %v326, 0
        %v338 = vperm.slane %v326, 1
        %v339 = vperm.slane %v329, 0
        %v340 = vperm.slane %v329, 1
        %v341 = vperm.slane %v332, 0
        %v342 = vperm.slane %v332, 1
        %v353 = vmul.f32 %v333, %v280
        %v354 = vmul.f32 %v334, %v281
        %v355 = vmul.f32 %v333, %v282
        %v356 = vmul.f32 %v334, %v283
        %v357 = vmul.f32 %v335, %v280
        %v358 = vmul.f32 %v336, %v281
        %v359 = vmul.f32 %v335, %v282
        %v360 = vmul.f32 %v336, %v283
        %v361 = vmul.f32 %v337, %v280
        %v362 = vmul.f32 %v338, %v281
        %v363 = vmul.f32 %v337, %v282
        %v364 = vmul.f32 %v338, %v283
        %v365 = vmul.f32 %v339, %v280
        %v366 = vmul.f32 %v340, %v281
        %v367 = vmul.f32 %v339, %v282
        %v368 = vmul.f32 %v340, %v283
        %v369 = vmul.f32 %v341, %v280
        %v370 = vmul.f32 %v342, %v281
        %v371 = vmul.f32 %v341, %v282
        %v372 = vmul.f32 %v342, %v283
        %v373 = vld [vmem:[#allocation2] sm:$0xff]
        %v374 = vld [vmem:[#allocation2 + $0x8] sm:$0xff]
        %v375 = vld [vmem:[#allocation2 + $0x10] sm:$0xff]
        %v376 = vld [vmem:[#allocation2 + $0x18] sm:$0xff]
        %v377 = vld [vmem:[#allocation2 + $0x20] sm:$0xff]
        %v378 = vld [vmem:[#allocation2 + $0x28] sm:$0xff]
        %v379 = vld [vmem:[#allocation2 + $0x30] sm:$0xff]
        %v380 = vld [vmem:[#allocation2 + $0x38] sm:$0xff]
        %v381 = vld [vmem:[#allocation2 + $0x40] sm:$0xff]
        %v382 = vld [vmem:[#allocation2 + $0x48] sm:$0xff]
        %383 = vmatpush.xpose.msra.mxu0 0.0
        %384 = vmatpush.xpose.msra.mxu0 0.0
        %385 = vmatpush.xpose.msra.mxu0 0.0
        %386 = vmatpush.xpose.msra.mxu0 0.0
        %387 = vmatpush.xpose.msra.mxu0 0.0
        %388 = vmatpush.xpose.msra.mxu0 0.0
        %389 = vmatpush.xpose.msra.mxu0 0.0
        %390 = vmatpush.xpose.msra.mxu0 0.0
        %391 = vmatpush.xpose.msra.mxu0 0.0
        %392 = vmatpush.xpose.msra.mxu0 0.0
        %393 = vmatpush.xpose.msra.mxu0 0.0
        %394 = vmatpush.xpose.msra.mxu0 0.0
        %395 = vmatpush.xpose.msra.mxu0 0.0
        %396 = vmatpush.xpose.msra.mxu0 0.0
        %v397 = vand.u32 %v304, 4294901760
        %398 = vmatpush.xpose.msra.mxu0 %v397
        %v399 = vand.u32 %v302, 4294901760
        %400 = vmatpush.xpose.msra.mxu0 %v399
        %v401 = vand.u32 %v353, 4294901760
        %v402 = vsub.f32 %v353, %v401
        %v403 = vand.u32 %v402, 4294901760
        %v404 = vsub.f32 %v402, %v403
        %v405 = vand.u32 %v404, 4294901760
        %406 = vmatmul.f32.gmra.mxu0 %v405
        %v407 = vpop.f32.mrf.mxu0
        %v408 = vadd.f32 0.0, %v407
        %v409 = vand.u32 %v355, 4294901760
        %v410 = vsub.f32 %v355, %v409
        %v411 = vand.u32 %v410, 4294901760
        %v412 = vsub.f32 %v410, %v411
        %v413 = vand.u32 %v412, 4294901760
        %414 = vmatmul.f32.gmra.mxu0 %v413
        %v415 = vpop.f32.mrf.mxu0
        %v416 = vadd.f32 0.0, %v415
        %v417 = vand.u32 %v357, 4294901760
        %v418 = vsub.f32 %v357, %v417
        %v419 = vand.u32 %v418, 4294901760
        %v420 = vsub.f32 %v418, %v419
        %v421 = vand.u32 %v420, 4294901760
        %422 = vmatmul.f32.gmra.mxu0 %v421
        %v423 = vpop.f32.mrf.mxu0
        %v424 = vadd.f32 0.0, %v423
        %v425 = vand.u32 %v359, 4294901760
        %v426 = vsub.f32 %v359, %v425
        %v427 = vand.u32 %v426, 4294901760
        %v428 = vsub.f32 %v426, %v427
        %v429 = vand.u32 %v428, 4294901760
        %430 = vmatmul.f32.gmra.mxu0 %v429
        %v431 = vpop.f32.mrf.mxu0
        %v432 = vadd.f32 0.0, %v431
        %v433 = vand.u32 %v361, 4294901760
        %v434 = vsub.f32 %v361, %v433
        %v435 = vand.u32 %v434, 4294901760
        %v436 = vsub.f32 %v434, %v435
        %v437 = vand.u32 %v436, 4294901760
        %438 = vmatmul.f32.gmra.mxu0 %v437
        %v439 = vpop.f32.mrf.mxu0
        %v440 = vadd.f32 0.0, %v439
        %v441 = vand.u32 %v363, 4294901760
        %v442 = vsub.f32 %v363, %v441
        %v443 = vand.u32 %v442, 4294901760
        %v444 = vsub.f32 %v442, %v443
        %v445 = vand.u32 %v444, 4294901760
        %446 = vmatmul.f32.gmra.mxu0 %v445
        %v447 = vpop.f32.mrf.mxu0
        %v448 = vadd.f32 0.0, %v447
        %v449 = vand.u32 %v365, 4294901760
        %v450 = vsub.f32 %v365, %v449
        %v451 = vand.u32 %v450, 4294901760
        %v452 = vsub.f32 %v450, %v451
        %v453 = vand.u32 %v452, 4294901760
        %454 = vmatmul.f32.gmra.mxu0 %v453
        %v455 = vpop.f32.mrf.mxu0
        %v456 = vadd.f32 0.0, %v455
        %v457 = vand.u32 %v367, 4294901760
        %v458 = vsub.f32 %v367, %v457
        %v459 = vand.u32 %v458, 4294901760
        %v460 = vsub.f32 %v458, %v459
        %v461 = vand.u32 %v460, 4294901760
        %462 = vmatmul.f32.gmra.mxu0 %v461
        %v463 = vpop.f32.mrf.mxu0
        %v464 = vadd.f32 0.0, %v463
        %v465 = vand.u32 %v369, 4294901760
        %v466 = vsub.f32 %v369, %v465
        %v467 = vand.u32 %v466, 4294901760
        %v468 = vsub.f32 %v466, %v467
        %v469 = vand.u32 %v468, 4294901760
        %470 = vmatmul.f32.gmra.mxu0 %v469
        %v471 = vpop.f32.mrf.mxu0
        %v472 = vadd.f32 0.0, %v471
        %v473 = vand.u32 %v371, 4294901760
        %v474 = vsub.f32 %v371, %v473
        %v475 = vand.u32 %v474, 4294901760
        %v476 = vsub.f32 %v474, %v475
        %v477 = vand.u32 %v476, 4294901760
        %478 = vmatmul.f32.gmra.mxu0 %v477
        %v479 = vpop.f32.mrf.mxu0
        %v480 = vadd.f32 0.0, %v479
        %481 = vdwg.mxu0
        %482 = vmatpush.xpose.msra.mxu0 0.0
        %483 = vmatpush.xpose.msra.mxu0 0.0
        %484 = vmatpush.xpose.msra.mxu0 0.0
        %485 = vmatpush.xpose.msra.mxu0 0.0
        %486 = vmatpush.xpose.msra.mxu0 0.0
        %487 = vmatpush.xpose.msra.mxu0 0.0
        %488 = vmatpush.xpose.msra.mxu0 0.0
        %489 = vmatpush.xpose.msra.mxu0 0.0
        %490 = vmatpush.xpose.msra.mxu0 0.0
        %491 = vmatpush.xpose.msra.mxu0 0.0
        %492 = vmatpush.xpose.msra.mxu0 0.0
        %493 = vmatpush.xpose.msra.mxu0 0.0
        %494 = vmatpush.xpose.msra.mxu0 0.0
        %495 = vmatpush.xpose.msra.mxu0 0.0
        %v496 = vand.u32 %v304, 4294901760
        %v497 = vsub.f32 %v304, %v496
        %v498 = vand.u32 %v497, 4294901760
        %v499 = vsub.f32 %v497, %v498
        %v500 = vand.u32 %v499, 4294901760
        %501 = vmatpush.xpose.msra.mxu0 %v500
        %v502 = vand.u32 %v302, 4294901760
        %v503 = vsub.f32 %v302, %v502
        %v504 = vand.u32 %v503, 4294901760
        %v505 = vsub.f32 %v503, %v504
        %v506 = vand.u32 %v505, 4294901760
        %507 = vmatpush.xpose.msra.mxu0 %v506
        %v508 = vand.u32 %v353, 4294901760
        %509 = vmatmul.f32.gmra.mxu0 %v508
        %v510 = vpop.f32.mrf.mxu0
        %v511 = vadd.f32 %v408, %v510
        %v512 = vand.u32 %v355, 4294901760
        %513 = vmatmul.f32.gmra.mxu0 %v512
        %v514 = vpop.f32.mrf.mxu0
        %v515 = vadd.f32 %v416, %v514
        %v516 = vand.u32 %v357, 4294901760
        %517 = vmatmul.f32.gmra.mxu0 %v516
        %v518 = vpop.f32.mrf.mxu0
        %v519 = vadd.f32 %v424, %v518
        %v520 = vand.u32 %v359, 4294901760
        %521 = vmatmul.f32.gmra.mxu0 %v520
        %v522 = vpop.f32.mrf.mxu0
        %v523 = vadd.f32 %v432, %v522
        %v524 = vand.u32 %v361, 4294901760
        %525 = vmatmul.f32.gmra.mxu0 %v524
        %v526 = vpop.f32.mrf.mxu0
        %v527 = vadd.f32 %v440, %v526
        %v528 = vand.u32 %v363, 4294901760
        %529 = vmatmul.f32.gmra.mxu0 %v528
        %v530 = vpop.f32.mrf.mxu0
        %v531 = vadd.f32 %v448, %v530
        %v532 = vand.u32 %v365, 4294901760
        %533 = vmatmul.f32.gmra.mxu0 %v532
        %v534 = vpop.f32.mrf.mxu0
        %v535 = vadd.f32 %v456, %v534
        %v536 = vand.u32 %v367, 4294901760
        %537 = vmatmul.f32.gmra.mxu0 %v536
        %v538 = vpop.f32.mrf.mxu0
        %v539 = vadd.f32 %v464, %v538
        %v540 = vand.u32 %v369, 4294901760
        %541 = vmatmul.f32.gmra.mxu0 %v540
        %v542 = vpop.f32.mrf.mxu0
        %v543 = vadd.f32 %v472, %v542
        %v544 = vand.u32 %v371, 4294901760
        %545 = vmatmul.f32.gmra.mxu0 %v544
        %v546 = vpop.f32.mrf.mxu0
        %v547 = vadd.f32 %v480, %v546
        %548 = vdwg.mxu0
        %549 = vmatpush.xpose.msra.mxu0 0.0
        %550 = vmatpush.xpose.msra.mxu0 0.0
        %551 = vmatpush.xpose.msra.mxu0 0.0
        %552 = vmatpush.xpose.msra.mxu0 0.0
        %553 = vmatpush.xpose.msra.mxu0 0.0
        %554 = vmatpush.xpose.msra.mxu0 0.0
        %555 = vmatpush.xpose.msra.mxu0 0.0
        %556 = vmatpush.xpose.msra.mxu0 0.0
        %557 = vmatpush.xpose.msra.mxu0 0.0
        %558 = vmatpush.xpose.msra.mxu0 0.0
        %559 = vmatpush.xpose.msra.mxu0 0.0
        %560 = vmatpush.xpose.msra.mxu0 0.0
        %561 = vmatpush.xpose.msra.mxu0 0.0
        %562 = vmatpush.xpose.msra.mxu0 0.0
        %v563 = vand.u32 %v304, 4294901760
        %v564 = vsub.f32 %v304, %v563
        %565 = vmatpush.xpose.msra.mxu0 %v564
        %v566 = vand.u32 %v302, 4294901760
        %v567 = vsub.f32 %v302, %v566
        %568 = vmatpush.xpose.msra.mxu0 %v567
        %v569 = vand.u32 %v353, 4294901760
        %v570 = vsub.f32 %v353, %v569
        %571 = vmatmul.f32.gmra.mxu0 %v570
        %v572 = vpop.f32.mrf.mxu0
        %v573 = vadd.f32 %v511, %v572
        %v574 = vand.u32 %v355, 4294901760
        %v575 = vsub.f32 %v355, %v574
        %576 = vmatmul.f32.gmra.mxu0 %v575
        %v577 = vpop.f32.mrf.mxu0
        %v578 = vadd.f32 %v515, %v577
        %v579 = vand.u32 %v357, 4294901760
        %v580 = vsub.f32 %v357, %v579
        %581 = vmatmul.f32.gmra.mxu0 %v580
        %v582 = vpop.f32.mrf.mxu0
        %v583 = vadd.f32 %v519, %v582
        %v584 = vand.u32 %v359, 4294901760
        %v585 = vsub.f32 %v359, %v584
        %586 = vmatmul.f32.gmra.mxu0 %v585
        %v587 = vpop.f32.mrf.mxu0
        %v588 = vadd.f32 %v523, %v587
        %v589 = vand.u32 %v361, 4294901760
        %v590 = vsub.f32 %v361, %v589
        %591 = vmatmul.f32.gmra.mxu0 %v590
        %v592 = vpop.f32.mrf.mxu0
        %v593 = vadd.f32 %v527, %v592
        %v594 = vand.u32 %v363, 4294901760
        %v595 = vsub.f32 %v363, %v594
        %596 = vmatmul.f32.gmra.mxu0 %v595
        %v597 = vpop.f32.mrf.mxu0
        %v598 = vadd.f32 %v531, %v597
        %v599 = vand.u32 %v365, 4294901760
        %v600 = vsub.f32 %v365, %v599
        %601 = vmatmul.f32.gmra.mxu0 %v600
        %v602 = vpop.f32.mrf.mxu0
        %v603 = vadd.f32 %v535, %v602
        %v604 = vand.u32 %v367, 4294901760
        %v605 = vsub.f32 %v367, %v604
        %606 = vmatmul.f32.gmra.mxu0 %v605
        %v607 = vpop.f32.mrf.mxu0
        %v608 = vadd.f32 %v539, %v607
        %v609 = vand.u32 %v369, 4294901760
        %v610 = vsub.f32 %v369, %v609
        %611 = vmatmul.f32.gmra.mxu0 %v610
        %v612 = vpop.f32.mrf.mxu0
        %v613 = vadd.f32 %v543, %v612
        %v614 = vand.u32 %v371, 4294901760
        %v615 = vsub.f32 %v371, %v614
        %616 = vmatmul.f32.gmra.mxu0 %v615
        %v617 = vpop.f32.mrf.mxu0
        %v618 = vadd.f32 %v547, %v617
        %619 = vdwg.mxu0
        %620 = vmatpush.xpose.msra.mxu0 0.0
        %621 = vmatpush.xpose.msra.mxu0 0.0
        %622 = vmatpush.xpose.msra.mxu0 0.0
        %623 = vmatpush.xpose.msra.mxu0 0.0
        %624 = vmatpush.xpose.msra.mxu0 0.0
        %625 = vmatpush.xpose.msra.mxu0 0.0
        %626 = vmatpush.xpose.msra.mxu0 0.0
        %627 = vmatpush.xpose.msra.mxu0 0.0
        %628 = vmatpush.xpose.msra.mxu0 0.0
        %629 = vmatpush.xpose.msra.mxu0 0.0
        %630 = vmatpush.xpose.msra.mxu0 0.0
        %631 = vmatpush.xpose.msra.mxu0 0.0
        %632 = vmatpush.xpose.msra.mxu0 0.0
        %633 = vmatpush.xpose.msra.mxu0 0.0
        %v634 = vand.u32 %v304, 4294901760
        %635 = vmatpush.xpose.msra.mxu0 %v634
        %v636 = vand.u32 %v302, 4294901760
        %637 = vmatpush.xpose.msra.mxu0 %v636
        %v638 = vand.u32 %v353, 4294901760
        %v639 = vsub.f32 %v353, %v638
        %v640 = vand.u32 %v639, 4294901760
        %641 = vmatmul.f32.gmra.mxu0 %v640
        %v642 = vpop.f32.mrf.mxu0
        %v643 = vadd.f32 %v573, %v642
        %v644 = vand.u32 %v355, 4294901760
        %v645 = vsub.f32 %v355, %v644
        %v646 = vand.u32 %v645, 4294901760
        %647 = vmatmul.f32.gmra.mxu0 %v646
        %v648 = vpop.f32.mrf.mxu0
        %v649 = vadd.f32 %v578, %v648
        %v650 = vand.u32 %v357, 4294901760
        %v651 = vsub.f32 %v357, %v650
        %v652 = vand.u32 %v651, 4294901760
        %653 = vmatmul.f32.gmra.mxu0 %v652
        %v654 = vpop.f32.mrf.mxu0
        %v655 = vadd.f32 %v583, %v654
        %v656 = vand.u32 %v359, 4294901760
        %v657 = vsub.f32 %v359, %v656
        %v658 = vand.u32 %v657, 4294901760
        %659 = vmatmul.f32.gmra.mxu0 %v658
        %v660 = vpop.f32.mrf.mxu0
        %v661 = vadd.f32 %v588, %v660
        %v662 = vand.u32 %v361, 4294901760
        %v663 = vsub.f32 %v361, %v662
        %v664 = vand.u32 %v663, 4294901760
        %665 = vmatmul.f32.gmra.mxu0 %v664
        %v666 = vpop.f32.mrf.mxu0
        %v667 = vadd.f32 %v593, %v666
        %v668 = vand.u32 %v363, 4294901760
        %v669 = vsub.f32 %v363, %v668
        %v670 = vand.u32 %v669, 4294901760
        %671 = vmatmul.f32.gmra.mxu0 %v670
        %v672 = vpop.f32.mrf.mxu0
        %v673 = vadd.f32 %v598, %v672
        %v674 = vand.u32 %v365, 4294901760
        %v675 = vsub.f32 %v365, %v674
        %v676 = vand.u32 %v675, 4294901760
        %677 = vmatmul.f32.gmra.mxu0 %v676
        %v678 = vpop.f32.mrf.mxu0
        %v679 = vadd.f32 %v603, %v678
        %v680 = vand.u32 %v367, 4294901760
        %v681 = vsub.f32 %v367, %v680
        %v682 = vand.u32 %v681, 4294901760
        %683 = vmatmul.f32.gmra.mxu0 %v682
        %v684 = vpop.f32.mrf.mxu0
        %v685 = vadd.f32 %v608, %v684
        %v686 = vand.u32 %v369, 4294901760
        %v687 = vsub.f32 %v369, %v686
        %v688 = vand.u32 %v687, 4294901760
        %689 = vmatmul.f32.gmra.mxu0 %v688
        %v690 = vpop.f32.mrf.mxu0
        %v691 = vadd.f32 %v613, %v690
        %v692 = vand.u32 %v371, 4294901760
        %v693 = vsub.f32 %v371, %v692
        %v694 = vand.u32 %v693, 4294901760
        %695 = vmatmul.f32.gmra.mxu0 %v694
        %v696 = vpop.f32.mrf.mxu0
        %v697 = vadd.f32 %v618, %v696
        %698 = vdwg.mxu0
        %699 = vmatpush.xpose.msra.mxu0 0.0
        %700 = vmatpush.xpose.msra.mxu0 0.0
        %701 = vmatpush.xpose.msra.mxu0 0.0
        %702 = vmatpush.xpose.msra.mxu0 0.0
        %703 = vmatpush.xpose.msra.mxu0 0.0
        %704 = vmatpush.xpose.msra.mxu0 0.0
        %705 = vmatpush.xpose.msra.mxu0 0.0
        %706 = vmatpush.xpose.msra.mxu0 0.0
        %707 = vmatpush.xpose.msra.mxu0 0.0
        %708 = vmatpush.xpose.msra.mxu0 0.0
        %709 = vmatpush.xpose.msra.mxu0 0.0
        %710 = vmatpush.xpose.msra.mxu0 0.0
        %711 = vmatpush.xpose.msra.mxu0 0.0
        %712 = vmatpush.xpose.msra.mxu0 0.0
        %v713 = vand.u32 %v304, 4294901760
        %v714 = vsub.f32 %v304, %v713
        %v715 = vand.u32 %v714, 4294901760
        %716 = vmatpush.xpose.msra.mxu0 %v715
        %v717 = vand.u32 %v302, 4294901760
        %v718 = vsub.f32 %v302, %v717
        %v719 = vand.u32 %v718, 4294901760
        %720 = vmatpush.xpose.msra.mxu0 %v719
        %v721 = vand.u32 %v353, 4294901760
        %722 = vmatmul.f32.gmra.mxu0 %v721
        %v723 = vpop.f32.mrf.mxu0
        %v724 = vadd.f32 %v643, %v723
        %v725 = vand.u32 %v355, 4294901760
        %726 = vmatmul.f32.gmra.mxu0 %v725
        %v727 = vpop.f32.mrf.mxu0
        %v728 = vadd.f32 %v649, %v727
        %v729 = vand.u32 %v357, 4294901760
        %730 = vmatmul.f32.gmra.mxu0 %v729
        %v731 = vpop.f32.mrf.mxu0
        %v732 = vadd.f32 %v655, %v731
        %v733 = vand.u32 %v359, 4294901760
        %734 = vmatmul.f32.gmra.mxu0 %v733
        %v735 = vpop.f32.mrf.mxu0
        %v736 = vadd.f32 %v661, %v735
        %v737 = vand.u32 %v361, 4294901760
        %738 = vmatmul.f32.gmra.mxu0 %v737
        %v739 = vpop.f32.mrf.mxu0
        %v740 = vadd.f32 %v667, %v739
        %v741 = vand.u32 %v363, 4294901760
        %742 = vmatmul.f32.gmra.mxu0 %v741
        %v743 = vpop.f32.mrf.mxu0
        %v744 = vadd.f32 %v673, %v743
        %v745 = vand.u32 %v365, 4294901760
        %746 = vmatmul.f32.gmra.mxu0 %v745
        %v747 = vpop.f32.mrf.mxu0
        %v748 = vadd.f32 %v679, %v747
        %v749 = vand.u32 %v367, 4294901760
        %750 = vmatmul.f32.gmra.mxu0 %v749
        %v751 = vpop.f32.mrf.mxu0
        %v752 = vadd.f32 %v685, %v751
        %v753 = vand.u32 %v369, 4294901760
        %754 = vmatmul.f32.gmra.mxu0 %v753
        %v755 = vpop.f32.mrf.mxu0
        %v756 = vadd.f32 %v691, %v755
        %v757 = vand.u32 %v371, 4294901760
        %758 = vmatmul.f32.gmra.mxu0 %v757
        %v759 = vpop.f32.mrf.mxu0
        %v760 = vadd.f32 %v697, %v759
        %761 = vdwg.mxu0
        %762 = vmatpush.xpose.msra.mxu0 0.0
        %763 = vmatpush.xpose.msra.mxu0 0.0
        %764 = vmatpush.xpose.msra.mxu0 0.0
        %765 = vmatpush.xpose.msra.mxu0 0.0
        %766 = vmatpush.xpose.msra.mxu0 0.0
        %767 = vmatpush.xpose.msra.mxu0 0.0
        %768 = vmatpush.xpose.msra.mxu0 0.0
        %769 = vmatpush.xpose.msra.mxu0 0.0
        %770 = vmatpush.xpose.msra.mxu0 0.0
        %771 = vmatpush.xpose.msra.mxu0 0.0
        %772 = vmatpush.xpose.msra.mxu0 0.0
        %773 = vmatpush.xpose.msra.mxu0 0.0
        %774 = vmatpush.xpose.msra.mxu0 0.0
        %775 = vmatpush.xpose.msra.mxu0 0.0
        %v776 = vand.u32 %v304, 4294901760
        %777 = vmatpush.xpose.msra.mxu0 %v776
        %v778 = vand.u32 %v302, 4294901760
        %779 = vmatpush.xpose.msra.mxu0 %v778
        %v780 = vand.u32 %v353, 4294901760
        %781 = vmatmul.f32.gmra.mxu0 %v780
        %v782 = vpop.f32.mrf.mxu0
        %v783 = vadd.f32 %v724, %v782
        %v784 = vand.u32 %v355, 4294901760
        %785 = vmatmul.f32.gmra.mxu0 %v784
        %v786 = vpop.f32.mrf.mxu0
        %v787 = vadd.f32 %v728, %v786
        %v788 = vand.u32 %v357, 4294901760
        %789 = vmatmul.f32.gmra.mxu0 %v788
        %v790 = vpop.f32.mrf.mxu0
        %v791 = vadd.f32 %v732, %v790
        %v792 = vand.u32 %v359, 4294901760
        %793 = vmatmul.f32.gmra.mxu0 %v792
        %v794 = vpop.f32.mrf.mxu0
        %v795 = vadd.f32 %v736, %v794
        %v796 = vand.u32 %v361, 4294901760
        %797 = vmatmul.f32.gmra.mxu0 %v796
        %v798 = vpop.f32.mrf.mxu0
        %v799 = vadd.f32 %v740, %v798
        %v800 = vand.u32 %v363, 4294901760
        %801 = vmatmul.f32.gmra.mxu0 %v800
        %v802 = vpop.f32.mrf.mxu0
        %v803 = vadd.f32 %v744, %v802
        %v804 = vand.u32 %v365, 4294901760
        %805 = vmatmul.f32.gmra.mxu0 %v804
        %v806 = vpop.f32.mrf.mxu0
        %v807 = vadd.f32 %v748, %v806
        %v808 = vand.u32 %v367, 4294901760
        %809 = vmatmul.f32.gmra.mxu0 %v808
        %v810 = vpop.f32.mrf.mxu0
        %v811 = vadd.f32 %v752, %v810
        %v812 = vand.u32 %v369, 4294901760
        %813 = vmatmul.f32.gmra.mxu0 %v812
        %v814 = vpop.f32.mrf.mxu0
        %v815 = vadd.f32 %v756, %v814
        %v816 = vand.u32 %v371, 4294901760
        %817 = vmatmul.f32.gmra.mxu0 %v816
        %v818 = vpop.f32.mrf.mxu0
        %v819 = vadd.f32 %v760, %v818
        %820 = vdwg.mxu0
        %821 = vmatpush.xpose.msra.mxu0 0.0
        %822 = vmatpush.xpose.msra.mxu0 0.0
        %823 = vmatpush.xpose.msra.mxu0 0.0
        %824 = vmatpush.xpose.msra.mxu0 0.0
        %825 = vmatpush.xpose.msra.mxu0 0.0
        %826 = vmatpush.xpose.msra.mxu0 0.0
        %827 = vmatpush.xpose.msra.mxu0 0.0
        %828 = vmatpush.xpose.msra.mxu0 0.0
        %829 = vmatpush.xpose.msra.mxu0 0.0
        %830 = vmatpush.xpose.msra.mxu0 0.0
        %831 = vmatpush.xpose.msra.mxu0 0.0
        %832 = vmatpush.xpose.msra.mxu0 0.0
        %833 = vmatpush.xpose.msra.mxu0 0.0
        %834 = vmatpush.xpose.msra.mxu0 0.0
        %v835 = vand.u32 %v305, 4294901760
        %836 = vmatpush.xpose.msra.mxu0 %v835
        %v837 = vand.u32 %v303, 4294901760
        %838 = vmatpush.xpose.msra.mxu0 %v837
        %v839 = vand.u32 %v354, 4294901760
        %v840 = vsub.f32 %v354, %v839
        %v841 = vand.u32 %v840, 4294901760
        %v842 = vsub.f32 %v840, %v841
        %v843 = vand.u32 %v842, 4294901760
        %844 = vmatmul.f32.gmra.mxu0 %v843
        %v845 = vpop.f32.mrf.mxu0
        %v846 = vadd.f32 %v783, %v845
        %v847 = vand.u32 %v356, 4294901760
        %v848 = vsub.f32 %v356, %v847
        %v849 = vand.u32 %v848, 4294901760
        %v850 = vsub.f32 %v848, %v849
        %v851 = vand.u32 %v850, 4294901760
        %852 = vmatmul.f32.gmra.mxu0 %v851
        %v853 = vpop.f32.mrf.mxu0
        %v854 = vadd.f32 %v787, %v853
        %v855 = vand.u32 %v358, 4294901760
        %v856 = vsub.f32 %v358, %v855
        %v857 = vand.u32 %v856, 4294901760
        %v858 = vsub.f32 %v856, %v857
        %v859 = vand.u32 %v858, 4294901760
        %860 = vmatmul.f32.gmra.mxu0 %v859
        %v861 = vpop.f32.mrf.mxu0
        %v862 = vadd.f32 %v791, %v861
        %v863 = vand.u32 %v360, 4294901760
        %v864 = vsub.f32 %v360, %v863
        %v865 = vand.u32 %v864, 4294901760
        %v866 = vsub.f32 %v864, %v865
        %v867 = vand.u32 %v866, 4294901760
        %868 = vmatmul.f32.gmra.mxu0 %v867
        %v869 = vpop.f32.mrf.mxu0
        %v870 = vadd.f32 %v795, %v869
        %v871 = vand.u32 %v362, 4294901760
        %v872 = vsub.f32 %v362, %v871
        %v873 = vand.u32 %v872, 4294901760
        %v874 = vsub.f32 %v872, %v873
        %v875 = vand.u32 %v874, 4294901760
        %876 = vmatmul.f32.gmra.mxu0 %v875
        %v877 = vpop.f32.mrf.mxu0
        %v878 = vadd.f32 %v799, %v877
        %v879 = vand.u32 %v364, 4294901760
        %v880 = vsub.f32 %v364, %v879
        %v881 = vand.u32 %v880, 4294901760
        %v882 = vsub.f32 %v880, %v881
        %v883 = vand.u32 %v882, 4294901760
        %884 = vmatmul.f32.gmra.mxu0 %v883
        %v885 = vpop.f32.mrf.mxu0
        %v886 = vadd.f32 %v803, %v885
        %v887 = vand.u32 %v366, 4294901760
        %v888 = vsub.f32 %v366, %v887
        %v889 = vand.u32 %v888, 4294901760
        %v890 = vsub.f32 %v888, %v889
        %v891 = vand.u32 %v890, 4294901760
        %892 = vmatmul.f32.gmra.mxu0 %v891
        %v893 = vpop.f32.mrf.mxu0
        %v894 = vadd.f32 %v807, %v893
        %v895 = vand.u32 %v368, 4294901760
        %v896 = vsub.f32 %v368, %v895
        %v897 = vand.u32 %v896, 4294901760
        %v898 = vsub.f32 %v896, %v897
        %v899 = vand.u32 %v898, 4294901760
        %900 = vmatmul.f32.gmra.mxu0 %v899
        %v901 = vpop.f32.mrf.mxu0
        %v902 = vadd.f32 %v811, %v901
        %v903 = vand.u32 %v370, 4294901760
        %v904 = vsub.f32 %v370, %v903
        %v905 = vand.u32 %v904, 4294901760
        %v906 = vsub.f32 %v904, %v905
        %v907 = vand.u32 %v906, 4294901760
        %908 = vmatmul.f32.gmra.mxu0 %v907
        %v909 = vpop.f32.mrf.mxu0
        %v910 = vadd.f32 %v815, %v909
        %v911 = vand.u32 %v372, 4294901760
        %v912 = vsub.f32 %v372, %v911
        %v913 = vand.u32 %v912, 4294901760
        %v914 = vsub.f32 %v912, %v913
        %v915 = vand.u32 %v914, 4294901760
        %916 = vmatmul.f32.gmra.mxu0 %v915
        %v917 = vpop.f32.mrf.mxu0
        %v918 = vadd.f32 %v819, %v917
        %919 = vdwg.mxu0
        %920 = vmatpush.xpose.msra.mxu0 0.0
        %921 = vmatpush.xpose.msra.mxu0 0.0
        %922 = vmatpush.xpose.msra.mxu0 0.0
        %923 = vmatpush.xpose.msra.mxu0 0.0
        %924 = vmatpush.xpose.msra.mxu0 0.0
        %925 = vmatpush.xpose.msra.mxu0 0.0
        %926 = vmatpush.xpose.msra.mxu0 0.0
        %927 = vmatpush.xpose.msra.mxu0 0.0
        %928 = vmatpush.xpose.msra.mxu0 0.0
        %929 = vmatpush.xpose.msra.mxu0 0.0
        %930 = vmatpush.xpose.msra.mxu0 0.0
        %931 = vmatpush.xpose.msra.mxu0 0.0
        %932 = vmatpush.xpose.msra.mxu0 0.0
        %933 = vmatpush.xpose.msra.mxu0 0.0
        %v934 = vand.u32 %v305, 4294901760
        %v935 = vsub.f32 %v305, %v934
        %v936 = vand.u32 %v935, 4294901760
        %v937 = vsub.f32 %v935, %v936
        %v938 = vand.u32 %v937, 4294901760
        %939 = vmatpush.xpose.msra.mxu0 %v938
        %v940 = vand.u32 %v303, 4294901760
        %v941 = vsub.f32 %v303, %v940
        %v942 = vand.u32 %v941, 4294901760
        %v943 = vsub.f32 %v941, %v942
        %v944 = vand.u32 %v943, 4294901760
        %945 = vmatpush.xpose.msra.mxu0 %v944
        %v946 = vand.u32 %v354, 4294901760
        %947 = vmatmul.f32.gmra.mxu0 %v946
        %v948 = vpop.f32.mrf.mxu0
        %v949 = vadd.f32 %v846, %v948
        %v950 = vand.u32 %v356, 4294901760
        %951 = vmatmul.f32.gmra.mxu0 %v950
        %v952 = vpop.f32.mrf.mxu0
        %v953 = vadd.f32 %v854, %v952
        %v954 = vand.u32 %v358, 4294901760
        %955 = vmatmul.f32.gmra.mxu0 %v954
        %v956 = vpop.f32.mrf.mxu0
        %v957 = vadd.f32 %v862, %v956
        %v958 = vand.u32 %v360, 4294901760
        %959 = vmatmul.f32.gmra.mxu0 %v958
        %v960 = vpop.f32.mrf.mxu0
        %v961 = vadd.f32 %v870, %v960
        %v962 = vand.u32 %v362, 4294901760
        %963 = vmatmul.f32.gmra.mxu0 %v962
        %v964 = vpop.f32.mrf.mxu0
        %v965 = vadd.f32 %v878, %v964
        %v966 = vand.u32 %v364, 4294901760
        %967 = vmatmul.f32.gmra.mxu0 %v966
        %v968 = vpop.f32.mrf.mxu0
        %v969 = vadd.f32 %v886, %v968
        %v970 = vand.u32 %v366, 4294901760
        %971 = vmatmul.f32.gmra.mxu0 %v970
        %v972 = vpop.f32.mrf.mxu0
        %v973 = vadd.f32 %v894, %v972
        %v974 = vand.u32 %v368, 4294901760
        %975 = vmatmul.f32.gmra.mxu0 %v974
        %v976 = vpop.f32.mrf.mxu0
        %v977 = vadd.f32 %v902, %v976
        %v978 = vand.u32 %v370, 4294901760
        %979 = vmatmul.f32.gmra.mxu0 %v978
        %v980 = vpop.f32.mrf.mxu0
        %v981 = vadd.f32 %v910, %v980
        %v982 = vand.u32 %v372, 4294901760
        %983 = vmatmul.f32.gmra.mxu0 %v982
        %v984 = vpop.f32.mrf.mxu0
        %v985 = vadd.f32 %v918, %v984
        %986 = vdwg.mxu0
        %987 = vmatpush.xpose.msra.mxu0 0.0
        %988 = vmatpush.xpose.msra.mxu0 0.0
        %989 = vmatpush.xpose.msra.mxu0 0.0
        %990 = vmatpush.xpose.msra.mxu0 0.0
        %991 = vmatpush.xpose.msra.mxu0 0.0
        %992 = vmatpush.xpose.msra.mxu0 0.0
        %993 = vmatpush.xpose.msra.mxu0 0.0
        %994 = vmatpush.xpose.msra.mxu0 0.0
        %995 = vmatpush.xpose.msra.mxu0 0.0
        %996 = vmatpush.xpose.msra.mxu0 0.0
        %997 = vmatpush.xpose.msra.mxu0 0.0
        %998 = vmatpush.xpose.msra.mxu0 0.0
        %999 = vmatpush.xpose.msra.mxu0 0.0
        %1000 = vmatpush.xpose.msra.mxu0 0.0
        %v1001 = vand.u32 %v305, 4294901760
        %v1002 = vsub.f32 %v305, %v1001
        %1003 = vmatpush.xpose.msra.mxu0 %v1002
        %v1004 = vand.u32 %v303, 4294901760
        %v1005 = vsub.f32 %v303, %v1004
        %1006 = vmatpush.xpose.msra.mxu0 %v1005
        %v1007 = vand.u32 %v354, 4294901760
        %v1008 = vsub.f32 %v354, %v1007
        %1009 = vmatmul.f32.gmra.mxu0 %v1008
        %v1010 = vpop.f32.mrf.mxu0
        %v1011 = vadd.f32 %v949, %v1010
        %v1012 = vand.u32 %v356, 4294901760
        %v1013 = vsub.f32 %v356, %v1012
        %1014 = vmatmul.f32.gmra.mxu0 %v1013
        %v1015 = vpop.f32.mrf.mxu0
        %v1016 = vadd.f32 %v953, %v1015
        %v1017 = vand.u32 %v358, 4294901760
        %v1018 = vsub.f32 %v358, %v1017
        %1019 = vmatmul.f32.gmra.mxu0 %v1018
        %v1020 = vpop.f32.mrf.mxu0
        %v1021 = vadd.f32 %v957, %v1020
        %v1022 = vand.u32 %v360, 4294901760
        %v1023 = vsub.f32 %v360, %v1022
        %1024 = vmatmul.f32.gmra.mxu0 %v1023
        %v1025 = vpop.f32.mrf.mxu0
        %v1026 = vadd.f32 %v961, %v1025
        %v1027 = vand.u32 %v362, 4294901760
        %v1028 = vsub.f32 %v362, %v1027
        %1029 = vmatmul.f32.gmra.mxu0 %v1028
        %v1030 = vpop.f32.mrf.mxu0
        %v1031 = vadd.f32 %v965, %v1030
        %v1032 = vand.u32 %v364, 4294901760
        %v1033 = vsub.f32 %v364, %v1032
        %1034 = vmatmul.f32.gmra.mxu0 %v1033
        %v1035 = vpop.f32.mrf.mxu0
        %v1036 = vadd.f32 %v969, %v1035
        %v1037 = vand.u32 %v366, 4294901760
        %v1038 = vsub.f32 %v366, %v1037
        %1039 = vmatmul.f32.gmra.mxu0 %v1038
        %v1040 = vpop.f32.mrf.mxu0
        %v1041 = vadd.f32 %v973, %v1040
        %v1042 = vand.u32 %v368, 4294901760
        %v1043 = vsub.f32 %v368, %v1042
        %1044 = vmatmul.f32.gmra.mxu0 %v1043
        %v1045 = vpop.f32.mrf.mxu0
        %v1046 = vadd.f32 %v977, %v1045
        %v1047 = vand.u32 %v370, 4294901760
        %v1048 = vsub.f32 %v370, %v1047
        %1049 = vmatmul.f32.gmra.mxu0 %v1048
        %v1050 = vpop.f32.mrf.mxu0
        %v1051 = vadd.f32 %v981, %v1050
        %v1052 = vand.u32 %v372, 4294901760
        %v1053 = vsub.f32 %v372, %v1052
        %1054 = vmatmul.f32.gmra.mxu0 %v1053
        %v1055 = vpop.f32.mrf.mxu0
        %v1056 = vadd.f32 %v985, %v1055
        %1057 = vdwg.mxu0
        %1058 = vmatpush.xpose.msra.mxu0 0.0
        %1059 = vmatpush.xpose.msra.mxu0 0.0
        %1060 = vmatpush.xpose.msra.mxu0 0.0
        %1061 = vmatpush.xpose.msra.mxu0 0.0
        %1062 = vmatpush.xpose.msra.mxu0 0.0
        %1063 = vmatpush.xpose.msra.mxu0 0.0
        %1064 = vmatpush.xpose.msra.mxu0 0.0
        %1065 = vmatpush.xpose.msra.mxu0 0.0
        %1066 = vmatpush.xpose.msra.mxu0 0.0
        %1067 = vmatpush.xpose.msra.mxu0 0.0
        %1068 = vmatpush.xpose.msra.mxu0 0.0
        %1069 = vmatpush.xpose.msra.mxu0 0.0
        %1070 = vmatpush.xpose.msra.mxu0 0.0
        %1071 = vmatpush.xpose.msra.mxu0 0.0
        %v1072 = vand.u32 %v305, 4294901760
        %1073 = vmatpush.xpose.msra.mxu0 %v1072
        %v1074 = vand.u32 %v303, 4294901760
        %1075 = vmatpush.xpose.msra.mxu0 %v1074
        %v1076 = vand.u32 %v354, 4294901760
        %v1077 = vsub.f32 %v354, %v1076
        %v1078 = vand.u32 %v1077, 4294901760
        %1079 = vmatmul.f32.gmra.mxu0 %v1078
        %v1080 = vpop.f32.mrf.mxu0
        %v1081 = vadd.f32 %v1011, %v1080
        %v1082 = vand.u32 %v356, 4294901760
        %v1083 = vsub.f32 %v356, %v1082
        %v1084 = vand.u32 %v1083, 4294901760
        %1085 = vmatmul.f32.gmra.mxu0 %v1084
        %v1086 = vpop.f32.mrf.mxu0
        %v1087 = vadd.f32 %v1016, %v1086
        %v1088 = vand.u32 %v358, 4294901760
        %v1089 = vsub.f32 %v358, %v1088
        %v1090 = vand.u32 %v1089, 4294901760
        %1091 = vmatmul.f32.gmra.mxu0 %v1090
        %v1092 = vpop.f32.mrf.mxu0
        %v1093 = vadd.f32 %v1021, %v1092
        %v1094 = vand.u32 %v360, 4294901760
        %v1095 = vsub.f32 %v360, %v1094
        %v1096 = vand.u32 %v1095, 4294901760
        %1097 = vmatmul.f32.gmra.mxu0 %v1096
        %v1098 = vpop.f32.mrf.mxu0
        %v1099 = vadd.f32 %v1026, %v1098
        %v1100 = vand.u32 %v362, 4294901760
        %v1101 = vsub.f32 %v362, %v1100
        %v1102 = vand.u32 %v1101, 4294901760
        %1103 = vmatmul.f32.gmra.mxu0 %v1102
        %v1104 = vpop.f32.mrf.mxu0
        %v1105 = vadd.f32 %v1031, %v1104
        %v1106 = vand.u32 %v364, 4294901760
        %v1107 = vsub.f32 %v364, %v1106
        %v1108 = vand.u32 %v1107, 4294901760
        %1109 = vmatmul.f32.gmra.mxu0 %v1108
        %v1110 = vpop.f32.mrf.mxu0
        %v1111 = vadd.f32 %v1036, %v1110
        %v1112 = vand.u32 %v366, 4294901760
        %v1113 = vsub.f32 %v366, %v1112
        %v1114 = vand.u32 %v1113, 4294901760
        %1115 = vmatmul.f32.gmra.mxu0 %v1114
        %v1116 = vpop.f32.mrf.mxu0
        %v1117 = vadd.f32 %v1041, %v1116
        %v1118 = vand.u32 %v368, 4294901760
        %v1119 = vsub.f32 %v368, %v1118
        %v1120 = vand.u32 %v1119, 4294901760
        %1121 = vmatmul.f32.gmra.mxu0 %v1120
        %v1122 = vpop.f32.mrf.mxu0
        %v1123 = vadd.f32 %v1046, %v1122
        %v1124 = vand.u32 %v370, 4294901760
        %v1125 = vsub.f32 %v370, %v1124
        %v1126 = vand.u32 %v1125, 4294901760
        %1127 = vmatmul.f32.gmra.mxu0 %v1126
        %v1128 = vpop.f32.mrf.mxu0
        %v1129 = vadd.f32 %v1051, %v1128
        %v1130 = vand.u32 %v372, 4294901760
        %v1131 = vsub.f32 %v372, %v1130
        %v1132 = vand.u32 %v1131, 4294901760
        %1133 = vmatmul.f32.gmra.mxu0 %v1132
        %v1134 = vpop.f32.mrf.mxu0
        %v1135 = vadd.f32 %v1056, %v1134
        %1136 = vdwg.mxu0
        %1137 = vmatpush.xpose.msra.mxu0 0.0
        %1138 = vmatpush.xpose.msra.mxu0 0.0
        %1139 = vmatpush.xpose.msra.mxu0 0.0
        %1140 = vmatpush.xpose.msra.mxu0 0.0
        %1141 = vmatpush.xpose.msra.mxu0 0.0
        %1142 = vmatpush.xpose.msra.mxu0 0.0
        %1143 = vmatpush.xpose.msra.mxu0 0.0
        %1144 = vmatpush.xpose.msra.mxu0 0.0
        %1145 = vmatpush.xpose.msra.mxu0 0.0
        %1146 = vmatpush.xpose.msra.mxu0 0.0
        %1147 = vmatpush.xpose.msra.mxu0 0.0
        %1148 = vmatpush.xpose.msra.mxu0 0.0
        %1149 = vmatpush.xpose.msra.mxu0 0.0
        %1150 = vmatpush.xpose.msra.mxu0 0.0
        %v1151 = vand.u32 %v305, 4294901760
        %v1152 = vsub.f32 %v305, %v1151
        %v1153 = vand.u32 %v1152, 4294901760
        %1154 = vmatpush.xpose.msra.mxu0 %v1153
        %v1155 = vand.u32 %v303, 4294901760
        %v1156 = vsub.f32 %v303, %v1155
        %v1157 = vand.u32 %v1156, 4294901760
        %1158 = vmatpush.xpose.msra.mxu0 %v1157
        %v1159 = vand.u32 %v354, 4294901760
        %1160 = vmatmul.f32.gmra.mxu0 %v1159
        %v1161 = vpop.f32.mrf.mxu0
        %v1162 = vadd.f32 %v1081, %v1161
        %v1163 = vand.u32 %v356, 4294901760
        %1164 = vmatmul.f32.gmra.mxu0 %v1163
        %v1165 = vpop.f32.mrf.mxu0
        %v1166 = vadd.f32 %v1087, %v1165
        %v1167 = vand.u32 %v358, 4294901760
        %1168 = vmatmul.f32.gmra.mxu0 %v1167
        %v1169 = vpop.f32.mrf.mxu0
        %v1170 = vadd.f32 %v1093, %v1169
        %v1171 = vand.u32 %v360, 4294901760
        %1172 = vmatmul.f32.gmra.mxu0 %v1171
        %v1173 = vpop.f32.mrf.mxu0
        %v1174 = vadd.f32 %v1099, %v1173
        %v1175 = vand.u32 %v362, 4294901760
        %1176 = vmatmul.f32.gmra.mxu0 %v1175
        %v1177 = vpop.f32.mrf.mxu0
        %v1178 = vadd.f32 %v1105, %v1177
        %v1179 = vand.u32 %v364, 4294901760
        %1180 = vmatmul.f32.gmra.mxu0 %v1179
        %v1181 = vpop.f32.mrf.mxu0
        %v1182 = vadd.f32 %v1111, %v1181
        %v1183 = vand.u32 %v366, 4294901760
        %1184 = vmatmul.f32.gmra.mxu0 %v1183
        %v1185 = vpop.f32.mrf.mxu0
        %v1186 = vadd.f32 %v1117, %v1185
        %v1187 = vand.u32 %v368, 4294901760
        %1188 = vmatmul.f32.gmra.mxu0 %v1187
        %v1189 = vpop.f32.mrf.mxu0
        %v1190 = vadd.f32 %v1123, %v1189
        %v1191 = vand.u32 %v370, 4294901760
        %1192 = vmatmul.f32.gmra.mxu0 %v1191
        %v1193 = vpop.f32.mrf.mxu0
        %v1194 = vadd.f32 %v1129, %v1193
        %v1195 = vand.u32 %v372, 4294901760
        %1196 = vmatmul.f32.gmra.mxu0 %v1195
        %v1197 = vpop.f32.mrf.mxu0
        %v1198 = vadd.f32 %v1135, %v1197
        %1199 = vdwg.mxu0
        %1200 = vmatpush.xpose.msra.mxu0 0.0
        %1201 = vmatpush.xpose.msra.mxu0 0.0
        %1202 = vmatpush.xpose.msra.mxu0 0.0
        %1203 = vmatpush.xpose.msra.mxu0 0.0
        %1204 = vmatpush.xpose.msra.mxu0 0.0
        %1205 = vmatpush.xpose.msra.mxu0 0.0
        %1206 = vmatpush.xpose.msra.mxu0 0.0
        %1207 = vmatpush.xpose.msra.mxu0 0.0
        %1208 = vmatpush.xpose.msra.mxu0 0.0
        %1209 = vmatpush.xpose.msra.mxu0 0.0
        %1210 = vmatpush.xpose.msra.mxu0 0.0
        %1211 = vmatpush.xpose.msra.mxu0 0.0
        %1212 = vmatpush.xpose.msra.mxu0 0.0
        %1213 = vmatpush.xpose.msra.mxu0 0.0
        %v1214 = vand.u32 %v305, 4294901760
        %1215 = vmatpush.xpose.msra.mxu0 %v1214
        %v1216 = vand.u32 %v303, 4294901760
        %1217 = vmatpush.xpose.msra.mxu0 %v1216
        %v1218 = vand.u32 %v354, 4294901760
        %1219 = vmatmul.f32.gmra.mxu0 %v1218
        %v1220 = vpop.f32.mrf.mxu0
        %v1221 = vadd.f32 %v1162, %v1220
        %v1222 = vand.u32 %v356, 4294901760
        %1223 = vmatmul.f32.gmra.mxu0 %v1222
        %v1224 = vpop.f32.mrf.mxu0
        %v1225 = vadd.f32 %v1166, %v1224
        %v1226 = vand.u32 %v358, 4294901760
        %1227 = vmatmul.f32.gmra.mxu0 %v1226
        %v1228 = vpop.f32.mrf.mxu0
        %v1229 = vadd.f32 %v1170, %v1228
        %v1230 = vand.u32 %v360, 4294901760
        %1231 = vmatmul.f32.gmra.mxu0 %v1230
        %v1232 = vpop.f32.mrf.mxu0
        %v1233 = vadd.f32 %v1174, %v1232
        %v1234 = vand.u32 %v362, 4294901760
        %1235 = vmatmul.f32.gmra.mxu0 %v1234
        %v1236 = vpop.f32.mrf.mxu0
        %v1237 = vadd.f32 %v1178, %v1236
        %v1238 = vand.u32 %v364, 4294901760
        %1239 = vmatmul.f32.gmra.mxu0 %v1238
        %v1240 = vpop.f32.mrf.mxu0
        %v1241 = vadd.f32 %v1182, %v1240
        %v1242 = vand.u32 %v366, 4294901760
        %1243 = vmatmul.f32.gmra.mxu0 %v1242
        %v1244 = vpop.f32.mrf.mxu0
        %v1245 = vadd.f32 %v1186, %v1244
        %v1246 = vand.u32 %v368, 4294901760
        %1247 = vmatmul.f32.gmra.mxu0 %v1246
        %v1248 = vpop.f32.mrf.mxu0
        %v1249 = vadd.f32 %v1190, %v1248
        %v1250 = vand.u32 %v370, 4294901760
        %1251 = vmatmul.f32.gmra.mxu0 %v1250
        %v1252 = vpop.f32.mrf.mxu0
        %v1253 = vadd.f32 %v1194, %v1252
        %v1254 = vand.u32 %v372, 4294901760
        %1255 = vmatmul.f32.gmra.mxu0 %v1254
        %v1256 = vpop.f32.mrf.mxu0
        %v1257 = vadd.f32 %v1198, %v1256
        %1258 = vdwg.mxu0
        %v1259 = vadd.f32 %v373, %v1221
        %v1260 = vadd.f32 %v374, %v1225
        %v1261 = vadd.f32 %v375, %v1229
        %v1262 = vadd.f32 %v376, %v1233
        %v1263 = vadd.f32 %v377, %v1237
        %v1264 = vadd.f32 %v378, %v1241
        %v1265 = vadd.f32 %v379, %v1245
        %v1266 = vadd.f32 %v380, %v1249
        %v1267 = vadd.f32 %v381, %v1253
        %v1268 = vadd.f32 %v382, %v1257
        %vm1269 = vcmask 130048
        %1270 = vst.msk [vmem:[#allocation2] sm:$0xff] %vm1269, %v1259
        %1271 = vst.msk [vmem:[#allocation2 + $0x8] sm:$0xff] %vm1269, %v1260
        %1272 = vst.msk [vmem:[#allocation2 + $0x10] sm:$0xff] %vm1269, %v1261
        %1273 = vst.msk [vmem:[#allocation2 + $0x18] sm:$0xff] %vm1269, %v1262
        %1274 = vst.msk [vmem:[#allocation2 + $0x20] sm:$0xff] %vm1269, %v1263
        %1275 = vst.msk [vmem:[#allocation2 + $0x28] sm:$0xff] %vm1269, %v1264
        %1276 = vst.msk [vmem:[#allocation2 + $0x30] sm:$0xff] %vm1269, %v1265
        %1277 = vst.msk [vmem:[#allocation2 + $0x38] sm:$0xff] %vm1269, %v1266
        %1278 = vst.msk [vmem:[#allocation2 + $0x40] sm:$0xff] %vm1269, %v1267
        %1279 = vst.msk [vmem:[#allocation2 + $0x48] sm:$0xff] %vm1269, %v1268
        // Predicated region
        $region41: #{tpu_custom_call.1} parent=27 // pred_check
          %p1280 = pneg %p238
        $region42: #{tpu_custom_call.1} parent=27 // pred_check_branch
          %1282 = sbr.rel (%p1280) target = $region44
        $region43: #{tpu_custom_call.1} parent=27 // pred_region
          %v1283 = vld [vmem:[#allocation2] sm:$0xff]
          %v1284 = vld [vmem:[#allocation2 + $0x8] sm:$0xff]
          %v1285 = vld [vmem:[#allocation2 + $0x10] sm:$0xff]
          %v1286 = vld [vmem:[#allocation2 + $0x18] sm:$0xff]
          %v1287 = vld [vmem:[#allocation2 + $0x20] sm:$0xff]
          %v1288 = vld [vmem:[#allocation2 + $0x28] sm:$0xff]
          %v1289 = vld [vmem:[#allocation2 + $0x30] sm:$0xff]
          %v1290 = vld [vmem:[#allocation2 + $0x38] sm:$0xff]
          %v1291 = vld [vmem:[#allocation2 + $0x40] sm:$0xff]
          %v1292 = vld [vmem:[#allocation2 + $0x48] sm:$0xff]
          %vm1293 = vcmp.le.f32.partialorder %v1291, 1e-10
          %vm1294 = vcmp.le.f32.partialorder %v1292, 1e-10
          %v1295 = vadd.f32 %v1291, 1e-10
          %v1296 = vadd.f32 %v1292, 1e-10
          %v1297 = vrcp.pop %v1295
          %v1298 = vmul.f32 %v1295, %v1297
          %v1299 = vsub.f32 1.0, %v1298
          %v1300 = vmul.f32 %v1297, %v1299
          %v1301 = vadd.f32 %v1297, %v1300
          %vm1302 = vweird.f32 %v1295
          %vm1303 = vweird.f32 %v1297
          %vm1304 = vmor %vm1302, %vm1303
          %v1305 = vsel %vm1304, %v1297, %v1301
          %v1306 = vand.u32 2147483647, %v1295
          %vm1307 = vcmp.eq.f32.partialorder %v1306, 8.507059e+37
          %v1308 = vand.u32 %v1295, 2147483648
          %v1309 = vor.u32 1.1754944e-38, %v1308
          %v1310 = vsel %vm1307, %v1309, %v1305
          %v1311 = vrcp.pop %v1296
          %v1312 = vmul.f32 %v1296, %v1311
          %v1313 = vsub.f32 1.0, %v1312
          %v1314 = vmul.f32 %v1311, %v1313
          %v1315 = vadd.f32 %v1311, %v1314
          %vm1316 = vweird.f32 %v1296
          %vm1317 = vweird.f32 %v1311
          %vm1318 = vmor %vm1316, %vm1317
          %v1319 = vsel %vm1318, %v1311, %v1315
          %v1320 = vand.u32 2147483647, %v1296
          %vm1321 = vcmp.eq.f32.partialorder %v1320, 8.507059e+37
          %v1322 = vand.u32 %v1296, 2147483648
          %v1323 = vor.u32 1.1754944e-38, %v1322
          %v1324 = vsel %vm1321, %v1323, %v1319
          %v1325 = vsel %vm1293, 0.0, %v1310
          %v1326 = vsel %vm1294, 0.0, %v1324
          %v1327 = vsel %vm1293, 1.0, 0.0
          %v1328 = vsel %vm1294, 1.0, 0.0
          %v1329 = vmul.f32 %v1283, %v1325
          %v1330 = vmul.f32 %v1284, %v1326
          %v1331 = vmul.f32 %v1285, %v1325
          %v1332 = vmul.f32 %v1286, %v1326
          %v1333 = vmul.f32 %v1287, %v1325
          %v1334 = vmul.f32 %v1288, %v1326
          %v1335 = vmul.f32 %v1289, %v1325
          %v1336 = vmul.f32 %v1290, %v1326
          %v1337 = vadd.f32 %v1329, %v1327
          %v1338 = vadd.f32 %v1330, %v1328
          %v1339 = vadd.f32 %v1331, %v1327
          %v1340 = vadd.f32 %v1332, %v1328
          %v1341 = vadd.f32 %v1333, %v1327
          %v1342 = vadd.f32 %v1334, %v1328
          %v1343 = vadd.f32 %v1335, %v1327
          %v1344 = vadd.f32 %v1336, %v1328
          %1345 = vst.msk [vmem:[%s234] sm:$0xff] %vm1269, %v1337
          %1346 = vst.msk [vmem:[%s234 + $0x8] sm:$0xff] %vm1269, %v1338
          %1347 = vst.msk [vmem:[%s234 + $0x10] sm:$0xff] %vm1269, %v1339
          %1348 = vst.msk [vmem:[%s234 + $0x18] sm:$0xff] %vm1269, %v1340
          %1349 = vst.msk [vmem:[%s234 + $0x20] sm:$0xff] %vm1269, %v1341
          %1350 = vst.msk [vmem:[%s234 + $0x28] sm:$0xff] %vm1269, %v1342
          %1351 = vst.msk [vmem:[%s234 + $0x30] sm:$0xff] %vm1269, %v1343
          %1352 = vst.msk [vmem:[%s234 + $0x38] sm:$0xff] %vm1269, %v1344
        $region44: #{tpu_custom_call.1} parent=27 // pred_fallthru
          _
        %s1353 = sand.u32 %s109, 1
        %s1354 = scalar_lea.sflag [#allocation5], %s1353
        %s1355 = sand.u32 %s109, 1
        %s1356 = smul.addr %s1355, 64
        %s1357 = scalar_lea.vmem [#allocation8], %s1356
        // Predicated region
        $region45: #{tpu_custom_call.1} parent=27 // pred_check
          %p1358 = pneg %p119
        $region46: #{tpu_custom_call.1} parent=27 // pred_check_branch
          %1360 = sbr.rel (%p1358) target = $region48
        $region47: #{tpu_custom_call.1} parent=27 // pred_region
          %s1361 = smul.u32 4, %s28
          %1363 = vsyncadd %s1354, 0
          %s1364 = smul.addr %s1361, 2
          %s1365 = smul.addr %s27, 8
          %s1366 = sadd.s32 %s1364, %s1365
          %s1367 = smul.addr %s1366, 8
          %s1368 = scalar_lea.hbm %s2, %s1367
          %s1369 = sshll.u32 %s1357, 4
          %s1370 = int_to_ptr.vmem [resolvable:$true] %s1369
          %s1371 = sshll.u32 %s1368, 4
          %s1372 = int_to_ptr.hbm [resolvable:$true] %s1371
          %1377 = dma.vmem_to_hbm [thread:$0]  %s1370, 1024, %s1372, %s1354, 128, 128, 8
        $region48: #{tpu_custom_call.1} parent=27 // pred_fallthru
          _
      $region28: #{tpu_custom_call.1} parent=5 // pred_fallthru
        _
      %p1378 = scmp.le.s32.totalorder 2, %s17
      // Predicated region
      $region49: #{tpu_custom_call.1} parent=5 // pred_check
        %p1379 = pneg %p1378
      $region50: #{tpu_custom_call.1} parent=5 // pred_check_branch
        %1381 = sbr.rel (%p1379) target = $region52
      $region51: #{tpu_custom_call.1} parent=5 // pred_region
        %s1382 = ssub.s32 %s17, 2
        // Predicated region
        $region53: #{tpu_custom_call.1} parent=51 // pred_check
          %p1383 = pneg %p125
        $region54: #{tpu_custom_call.1} parent=51 // pred_check_branch
          %1385 = sbr.rel (%p1383) target = $region56
        $region55: #{tpu_custom_call.1} parent=51 // pred_region
          %s1386 = sand.u32 %s110, 1
          %s1387 = scalar_lea.sflag [#allocation5], %s1386
          %s1388 = sand.u32 %s110, 1
          %s1389 = smul.addr %s1388, 64
          %s1390 = scalar_lea.vmem [#allocation8], %s1389
          %1392 = dma.done %s1387, 1024
        $region56: #{tpu_custom_call.1} parent=51 // pred_fallthru
          _
      $region52: #{tpu_custom_call.1} parent=5 // pred_fallthru
        _
    $region6: #{tpu_custom_call.1} parent=1 // loop_footer
      %s21 = sadd.s32 1, %s17
    $region7: #{tpu_custom_call.1} parent=1 // loop_footer_branch
      %16 = sbr.rel target = $region3
    $region8: #{tpu_custom_call.1} parent=1 // loop_exit
      _
    %1393 = vsyncpa [#allocation4], 1
    %s1394 = scalar_lea.sflag [#allocation4], 1
    %1395 = vsyncpa %s1394, 1
    %1396 = vsyncpa [#allocation7], 1
    %s1397 = scalar_lea.sflag [#allocation7], 1
    %1398 = vsyncpa %s1397, 1
    %1399 = vsyncpa [#allocation5], 1
    %s1400 = scalar_lea.sflag [#allocation5], 1
    %1401 = vsyncpa %s1400, 1

</llo_original>
